<compile_context>
chip_gen: v7x
topology: tpu7x:2x2x1
jax: 0.10.0
libtpu: 0.0.40
codegen_flags: <defaults>
</compile_context>

<pallas_src>
import math

import jax
import jax.numpy as jnp
from jax.experimental import pallas as pl
from jax.experimental.pallas import tpu as pltpu

_SQRT2 = math.sqrt(2.0)
_LN_EPS = 1e-5  # PyTorch nn.LayerNorm default eps


def _gelu_exact(x):
    # nn.GELU() default = exact erf-based GELU
    return 0.5 * x * (1.0 + jax.lax.erf(x / _SQRT2))


def _layernorm(x, gamma, beta):
    mean = jnp.mean(x, axis=-1, keepdims=True)
    var = jnp.mean(jnp.square(x - mean), axis=-1, keepdims=True)
    return (x - mean) * jax.lax.rsqrt(var + _LN_EPS) * gamma + beta


# ---------------- fused Block kernel ----------------

def _make_block_kernel(has_proj):
    """One kernel = the entire Block.forward on a (tb, in_ch) batch tile."""

    def kernel(*refs):
        it = iter(refs)
        x_ref = next(it)       # (tb, in_ch)
        t_ref = next(it)       # (tb, time_dim)
        if has_proj:
            wp_ref = next(it)  # (in_ch, out_ch)
            bp_ref = next(it)  # (1, out_ch)
        g1_ref = next(it)      # (1, in_ch)   LayerNorm1 gamma
        be1_ref = next(it)     # (1, in_ch)   LayerNorm1 beta
        w1_ref = next(it)      # (in_ch, out_ch)   net1 Linear
        b1_ref = next(it)      # (1, out_ch)
        wt_ref = next(it)      # (time_dim, out_ch) time_mlp Linear
        bt_ref = next(it)      # (1, out_ch)
        g2_ref = next(it)      # (1, out_ch)  LayerNorm2 gamma
        be2_ref = next(it)     # (1, out_ch)  LayerNorm2 beta
        w2_ref = next(it)      # (out_ch, out_ch)  net2 Linear
        b2_ref = next(it)      # (1, out_ch)
        out_ref = next(it)     # (tb, out_ch)

        x = x_ref[...].astype(jnp.float32)
        t = t_ref[...].astype(jnp.float32)

        def mm(lhs_f32, w_ref_):
            # Cast LHS to the stored weight dtype (no-op for f32 weights,
            # native bf16 MXU path for bf16 weights); accumulate in f32.
            return jnp.dot(lhs_f32.astype(w_ref_.dtype), w_ref_[...],
                           preferred_element_type=jnp.float32)

        # residual = proj(x)  (Linear if in_ch != out_ch, else identity)
        if has_proj:
            residual = mm(x, wp_ref) + bp_ref[...]
        else:
            residual = x

        # x = net1(norm1(x)) ; Dropout = identity (eval)
        h = _layernorm(x, g1_ref[...], be1_ref[...])
        h = _gelu_exact(mm(h, w1_ref) + b1_ref[...])

        # time_emb = time_mlp(t)
        temb = _gelu_exact(mm(t, wt_ref) + bt_ref[...])

        # x = net2(norm2(x + time_emb)) + residual ; Dropout = identity (eval)
        h = h + temb
        h = _layernorm(h, g2_ref[...], be2_ref[...])
        h = _gelu_exact(mm(h, w2_ref) + b2_ref[...])

        out_ref[...] = (h + residual).astype(out_ref.dtype)

    return kernel


def block_forward(params, x, t):
    """Fused Pallas forward of Block(in_ch, out_ch, time_emb_dim) in eval mode."""
    B, in_ch = x.shape
    time_dim = t.shape[1]
    out_ch = params["net2"]["w"].shape[1]
    has_proj = params["proj"] is not None

    # Batch tiling: single tile for small B; 128-row tiles (sharded across
    # TensorCores via "parallel") when the caller batches up the batch dim.
    tb = 128 if (B % 128 == 0) else B
    grid = (B // tb,)

    inputs = [x, t]
    in_specs = [
        pl.BlockSpec((tb, in_ch), lambda i: (i, 0)),
        pl.BlockSpec((tb, time_dim), lambda i: (i, 0)),
    ]

    def add_param(arr):
        inputs.append(arr)
        nd = arr.ndim
        in_specs.append(pl.BlockSpec(arr.shape, lambda i, _nd=nd: (0,) * _nd))

    if has_proj:
        add_param(params["proj"]["w"])
        add_param(params["proj"]["b"])
    add_param(params["norm1"]["g"])
    add_param(params["norm1"]["b"])
    add_param(params["net1"]["w"])
    add_param(params["net1"]["b"])
    add_param(params["time_mlp"]["w"])
    add_param(params["time_mlp"]["b"])
    add_param(params["norm2"]["g"])
    add_param(params["norm2"]["b"])
    add_param(params["net2"]["w"])
    add_param(params["net2"]["b"])

    return pl.pallas_call(
        _make_block_kernel(has_proj),
        out_shape=jax.ShapeDtypeStruct((B, out_ch), jnp.float32),
        grid=grid,
        in_specs=in_specs,
        out_specs=pl.BlockSpec((tb, out_ch), lambda i: (i, 0)),
        compiler_params=pltpu.CompilerParams(
            dimension_semantics=("parallel",),
        ),
    )(*inputs)


# ---------------- parameter init (PyTorch-default-like, deterministic) ----------------

def init_block_params(key, in_ch, out_ch, time_emb_dim, param_dtype=jnp.float32):
    """Matches the PyTorch Block's parameter shapes.

    Linear weights are stored [in, out] (kernel computes x @ W); biases and LN
    params are pre-reshaped to (1, N).  param_dtype=jnp.bfloat16 halves weight
    DMA and uses the bf16 MXU path on v6e/v7x (f32 accumulation kept).
    """
    keys = iter(jax.random.split(key, 16))

    def linear(fi, fo):
        bound = 1.0 / math.sqrt(fi)  # PyTorch nn.Linear default (uniform) scale
        w = jax.random.uniform(next(keys), (fi, fo), jnp.float32, -bound, bound)
        b = jax.random.uniform(next(keys), (1, fo), jnp.float32, -bound, bound)
        return {"w": w.astype(param_dtype), "b": b}

    def layernorm(c):
        return {"g": jnp.ones((1, c), jnp.float32), "b": jnp.zeros((1, c), jnp.float32)}

    return {
        "time_mlp": linear(time_emb_dim, out_ch),
        "norm1": layernorm(in_ch),
        "net1": linear(in_ch, out_ch),
        "norm2": layernorm(out_ch),
        "net2": linear(out_ch, out_ch),
        "proj": linear(in_ch, out_ch) if in_ch != out_ch else None,
    }


# ---------------- pure-JAX reference (for in-script correctness check) ----------------

def block_reference(params, x, t):
    def mm(a, w):
        return jnp.dot(a.astype(w.dtype), w, preferred_element_type=jnp.float32)

    if params["proj"] is not None:
        residual = mm(x, params["proj"]["w"]) + params["proj"]["b"]
    else:
        residual = x
    h = _layernorm(x, params["norm1"]["g"], params["norm1"]["b"])
    h = _gelu_exact(mm(h, params["net1"]["w"]) + params["net1"]["b"])
    temb = _gelu_exact(mm(t, params["time_mlp"]["w"]) + params["time_mlp"]["b"])
    h = h + temb
    h = _layernorm(h, params["norm2"]["g"], params["norm2"]["b"])
    h = _gelu_exact(mm(h, params["net2"]["w"]) + params["net2"]["b"])
    return h + residual


if __name__ == "__main__":
    # Small, lane-friendly shapes consistent with the module.
    B = 8
    IN_CH = 128
    OUT_CH = 256
    TIME_DIM = 128

    key = jax.random.PRNGKey(0)
    k_pa, k_pb, k_x, k_t = jax.random.split(key, 4)

    # Block with projection (in_ch != out_ch) and block with identity proj.
    params_a = init_block_params(k_pa, IN_CH, OUT_CH, TIME_DIM)
    params_b = init_block_params(k_pb, OUT_CH, OUT_CH, TIME_DIM)

    x = jax.random.normal(k_x, (B, IN_CH), dtype=jnp.float32)
    t = jax.random.normal(k_t, (B, TIME_DIM), dtype=jnp.float32)

    fwd = jax.jit(lambda pa, pb, xx, tt: block_forward(pb, block_forward(pa, xx, tt), tt))
    out = jax.block_until_ready(fwd(params_a, params_b, x, t))

    ref = block_reference(params_b, block_reference(params_a, x, t), t)

    assert out.shape == (B, OUT_CH)
    assert bool(jnp.all(jnp.isfinite(out)))
    assert bool(jnp.allclose(out, ref, rtol=1e-2, atol=1e-2)), \
        f"max abs err {float(jnp.max(jnp.abs(out - ref)))}"
    print("KERNEL_OK")
</pallas_src>

<mosaic_0001>
module attributes {stable_mosaic.version = 11 : i64} {
  func.func @kernel(%arg0: i32, %arg1: memref<8x128xf32, #tpu.memory_space<vmem>>, %arg2: memref<8x128xf32, #tpu.memory_space<vmem>>, %arg3: memref<128x256xf32, #tpu.memory_space<vmem>>, %arg4: memref<1x256xf32, #tpu.memory_space<vmem>>, %arg5: memref<1x128xf32, #tpu.memory_space<vmem>>, %arg6: memref<1x128xf32, #tpu.memory_space<vmem>>, %arg7: memref<128x256xf32, #tpu.memory_space<vmem>>, %arg8: memref<1x256xf32, #tpu.memory_space<vmem>>, %arg9: memref<128x256xf32, #tpu.memory_space<vmem>>, %arg10: memref<1x256xf32, #tpu.memory_space<vmem>>, %arg11: memref<1x256xf32, #tpu.memory_space<vmem>>, %arg12: memref<1x256xf32, #tpu.memory_space<vmem>>, %arg13: memref<256x256xf32, #tpu.memory_space<vmem>>, %arg14: memref<1x256xf32, #tpu.memory_space<vmem>>, %arg15: memref<8x256xf32, #tpu.memory_space<vmem>>) attributes {dimension_semantics = [#tpu.dimension_semantics<parallel>], iteration_bounds = array<i64: 1>, scalar_prefetch = 0 : i64, scratch_operands = 0 : i64, tpu.core_type = #tpu.core_type<tc>, window_params = [{transform_indices = @transform_0, window_bounds = array<i64: 8, 128>}, {transform_indices = @transform_1, window_bounds = array<i64: 8, 128>}, {pipeline_mode = #tpu.pipeline_mode<synchronous>, transform_indices = @transform_2, window_bounds = array<i64: 128, 256>}, {pipeline_mode = #tpu.pipeline_mode<synchronous>, transform_indices = @transform_3, window_bounds = array<i64: 1, 256>}, {pipeline_mode = #tpu.pipeline_mode<synchronous>, transform_indices = @transform_4, window_bounds = array<i64: 1, 128>}, {pipeline_mode = #tpu.pipeline_mode<synchronous>, transform_indices = @transform_5, window_bounds = array<i64: 1, 128>}, {pipeline_mode = #tpu.pipeline_mode<synchronous>, transform_indices = @transform_6, window_bounds = array<i64: 128, 256>}, {pipeline_mode = #tpu.pipeline_mode<synchronous>, transform_indices = @transform_7, window_bounds = array<i64: 1, 256>}, {pipeline_mode = #tpu.pipeline_mode<synchronous>, transform_indices = @transform_8, window_bounds = array<i64: 128, 256>}, {pipeline_mode = #tpu.pipeline_mode<synchronous>, transform_indices = @transform_9, window_bounds = array<i64: 1, 256>}, {pipeline_mode = #tpu.pipeline_mode<synchronous>, transform_indices = @transform_10, window_bounds = array<i64: 1, 256>}, {pipeline_mode = #tpu.pipeline_mode<synchronous>, transform_indices = @transform_11, window_bounds = array<i64: 1, 256>}, {pipeline_mode = #tpu.pipeline_mode<synchronous>, transform_indices = @transform_12, window_bounds = array<i64: 256, 256>}, {pipeline_mode = #tpu.pipeline_mode<synchronous>, transform_indices = @transform_13, window_bounds = array<i64: 1, 256>}, {transform_indices = @transform_14, window_bounds = array<i64: 8, 256>}]} {
    %c0 = arith.constant 0 : index
    %c0_0 = arith.constant 0 : index
    %0 = vector.load %arg1[%c0, %c0_0] : memref<8x128xf32, #tpu.memory_space<vmem>>, vector<8x128xf32>
    %c0_1 = arith.constant 0 : index
    %c0_2 = arith.constant 0 : index
    %1 = vector.load %arg2[%c0_1, %c0_2] : memref<8x128xf32, #tpu.memory_space<vmem>>, vector<8x128xf32>
    %c0_3 = arith.constant 0 : index
    %c0_4 = arith.constant 0 : index
    %2 = vector.load %arg3[%c0_3, %c0_4] : memref<128x256xf32, #tpu.memory_space<vmem>>, vector<128x256xf32>
    %cst = arith.constant dense<0.000000e+00> : vector<8x256xf32>
    %3 = tpu.matmul %0, %2, %cst {dimension_numbers = #tpu.dot_dimension_numbers<[1], [0], [0], [1], [0, 0, 1, 1], [], []>} : vector<8x128xf32>, vector<128x256xf32>, vector<8x256xf32> -> vector<8x256xf32>
    %c0_5 = arith.constant 0 : index
    %c0_6 = arith.constant 0 : index
    %4 = vector.load %arg4[%c0_5, %c0_6] : memref<1x256xf32, #tpu.memory_space<vmem>>, vector<1x256xf32>
    %5 = vector.broadcast %4 : vector<1x256xf32> to vector<8x256xf32>
    %6 = arith.addf %3, %5 : vector<8x256xf32>
    %c0_7 = arith.constant 0 : index
    %c0_8 = arith.constant 0 : index
    %7 = vector.load %arg5[%c0_7, %c0_8] : memref<1x128xf32, #tpu.memory_space<vmem>>, vector<1x128xf32>
    %c0_9 = arith.constant 0 : index
    %c0_10 = arith.constant 0 : index
    %8 = vector.load %arg6[%c0_9, %c0_10] : memref<1x128xf32, #tpu.memory_space<vmem>>, vector<1x128xf32>
    %cst_11 = arith.constant dense<0.000000e+00> : vector<8xf32>
    %9 = vector.multi_reduction <add>, %0, %cst_11 [1] : vector<8x128xf32> to vector<8xf32>
    %10 = vector.shape_cast %9 : vector<8xf32> to vector<8x1xf32>
    %cst_12 = arith.constant 1.280000e+02 : f32
    %11 = vector.broadcast %cst_12 : f32 to vector<8x1xf32>
    %12 = arith.divf %10, %11 : vector<8x1xf32>
    %13 = vector.broadcast %12 : vector<8x1xf32> to vector<8x128xf32>
    %14 = arith.subf %0, %13 : vector<8x128xf32>
    %15 = arith.mulf %14, %14 : vector<8x128xf32>
    %cst_13 = arith.constant dense<0.000000e+00> : vector<8xf32>
    %16 = vector.multi_reduction <add>, %15, %cst_13 [1] : vector<8x128xf32> to vector<8xf32>
    %17 = vector.shape_cast %16 : vector<8xf32> to vector<8x1xf32>
    %cst_14 = arith.constant 1.280000e+02 : f32
    %18 = vector.broadcast %cst_14 : f32 to vector<8x1xf32>
    %19 = arith.divf %17, %18 : vector<8x1xf32>
    %20 = vector.broadcast %12 : vector<8x1xf32> to vector<8x128xf32>
    %21 = arith.subf %0, %20 : vector<8x128xf32>
    %cst_15 = arith.constant 9.99999974E-6 : f32
    %22 = vector.broadcast %cst_15 : f32 to vector<8x1xf32>
    %23 = arith.addf %19, %22 : vector<8x1xf32>
    %24 = math.rsqrt %23 : vector<8x1xf32>
    %25 = vector.broadcast %24 : vector<8x1xf32> to vector<8x128xf32>
    %26 = arith.mulf %21, %25 : vector<8x128xf32>
    %27 = vector.broadcast %7 : vector<1x128xf32> to vector<8x128xf32>
    %28 = arith.mulf %26, %27 : vector<8x128xf32>
    %29 = vector.broadcast %8 : vector<1x128xf32> to vector<8x128xf32>
    %30 = arith.addf %28, %29 : vector<8x128xf32>
    %c0_16 = arith.constant 0 : index
    %c0_17 = arith.constant 0 : index
    %31 = vector.load %arg7[%c0_16, %c0_17] : memref<128x256xf32, #tpu.memory_space<vmem>>, vector<128x256xf32>
    %cst_18 = arith.constant dense<0.000000e+00> : vector<8x256xf32>
    %32 = tpu.matmul %30, %31, %cst_18 {dimension_numbers = #tpu.dot_dimension_numbers<[1], [0], [0], [1], [0, 0, 1, 1], [], []>} : vector<8x128xf32>, vector<128x256xf32>, vector<8x256xf32> -> vector<8x256xf32>
    %c0_19 = arith.constant 0 : index
    %c0_20 = arith.constant 0 : index
    %33 = vector.load %arg8[%c0_19, %c0_20] : memref<1x256xf32, #tpu.memory_space<vmem>>, vector<1x256xf32>
    %34 = vector.broadcast %33 : vector<1x256xf32> to vector<8x256xf32>
    %35 = arith.addf %32, %34 : vector<8x256xf32>
    %cst_21 = arith.constant 5.000000e-01 : f32
    %36 = vector.broadcast %cst_21 : f32 to vector<8x256xf32>
    %37 = arith.mulf %36, %35 : vector<8x256xf32>
    %cst_22 = arith.constant 1.41421354 : f32
    %38 = vector.broadcast %cst_22 : f32 to vector<8x256xf32>
    %39 = arith.divf %35, %38 : vector<8x256xf32>
    %40 = math.erf %39 : vector<8x256xf32>
    %cst_23 = arith.constant 1.000000e+00 : f32
    %41 = vector.broadcast %cst_23 : f32 to vector<8x256xf32>
    %42 = arith.addf %41, %40 : vector<8x256xf32>
    %43 = arith.mulf %37, %42 : vector<8x256xf32>
    %c0_24 = arith.constant 0 : index
    %c0_25 = arith.constant 0 : index
    %44 = vector.load %arg9[%c0_24, %c0_25] : memref<128x256xf32, #tpu.memory_space<vmem>>, vector<128x256xf32>
    %cst_26 = arith.constant dense<0.000000e+00> : vector<8x256xf32>
    %45 = tpu.matmul %1, %44, %cst_26 {dimension_numbers = #tpu.dot_dimension_numbers<[1], [0], [0], [1], [0, 0, 1, 1], [], []>} : vector<8x128xf32>, vector<128x256xf32>, vector<8x256xf32> -> vector<8x256xf32>
    %c0_27 = arith.constant 0 : index
    %c0_28 = arith.constant 0 : index
    %46 = vector.load %arg10[%c0_27, %c0_28] : memref<1x256xf32, #tpu.memory_space<vmem>>, vector<1x256xf32>
    %47 = vector.broadcast %46 : vector<1x256xf32> to vector<8x256xf32>
    %48 = arith.addf %45, %47 : vector<8x256xf32>
    %cst_29 = arith.constant 5.000000e-01 : f32
    %49 = vector.broadcast %cst_29 : f32 to vector<8x256xf32>
    %50 = arith.mulf %49, %48 : vector<8x256xf32>
    %cst_30 = arith.constant 1.41421354 : f32
    %51 = vector.broadcast %cst_30 : f32 to vector<8x256xf32>
    %52 = arith.divf %48, %51 : vector<8x256xf32>
    %53 = math.erf %52 : vector<8x256xf32>
    %cst_31 = arith.constant 1.000000e+00 : f32
    %54 = vector.broadcast %cst_31 : f32 to vector<8x256xf32>
    %55 = arith.addf %54, %53 : vector<8x256xf32>
    %56 = arith.mulf %50, %55 : vector<8x256xf32>
    %57 = arith.addf %43, %56 : vector<8x256xf32>
    %c0_32 = arith.constant 0 : index
    %c0_33 = arith.constant 0 : index
    %58 = vector.load %arg11[%c0_32, %c0_33] : memref<1x256xf32, #tpu.memory_space<vmem>>, vector<1x256xf32>
    %c0_34 = arith.constant 0 : index
    %c0_35 = arith.constant 0 : index
    %59 = vector.load %arg12[%c0_34, %c0_35] : memref<1x256xf32, #tpu.memory_space<vmem>>, vector<1x256xf32>
    %cst_36 = arith.constant dense<0.000000e+00> : vector<8xf32>
    %60 = vector.multi_reduction <add>, %57, %cst_36 [1] : vector<8x256xf32> to vector<8xf32>
    %61 = vector.shape_cast %60 : vector<8xf32> to vector<8x1xf32>
    %cst_37 = arith.constant 2.560000e+02 : f32
    %62 = vector.broadcast %cst_37 : f32 to vector<8x1xf32>
    %63 = arith.divf %61, %62 : vector<8x1xf32>
    %64 = vector.broadcast %63 : vector<8x1xf32> to vector<8x256xf32>
    %65 = arith.subf %57, %64 : vector<8x256xf32>
    %66 = arith.mulf %65, %65 : vector<8x256xf32>
    %cst_38 = arith.constant dense<0.000000e+00> : vector<8xf32>
    %67 = vector.multi_reduction <add>, %66, %cst_38 [1] : vector<8x256xf32> to vector<8xf32>
    %68 = vector.shape_cast %67 : vector<8xf32> to vector<8x1xf32>
    %cst_39 = arith.constant 2.560000e+02 : f32
    %69 = vector.broadcast %cst_39 : f32 to vector<8x1xf32>
    %70 = arith.divf %68, %69 : vector<8x1xf32>
    %71 = vector.broadcast %63 : vector<8x1xf32> to vector<8x256xf32>
    %72 = arith.subf %57, %71 : vector<8x256xf32>
    %cst_40 = arith.constant 9.99999974E-6 : f32
    %73 = vector.broadcast %cst_40 : f32 to vector<8x1xf32>
    %74 = arith.addf %70, %73 : vector<8x1xf32>
    %75 = math.rsqrt %74 : vector<8x1xf32>
    %76 = vector.broadcast %75 : vector<8x1xf32> to vector<8x256xf32>
    %77 = arith.mulf %72, %76 : vector<8x256xf32>
    %78 = vector.broadcast %58 : vector<1x256xf32> to vector<8x256xf32>
    %79 = arith.mulf %77, %78 : vector<8x256xf32>
    %80 = vector.broadcast %59 : vector<1x256xf32> to vector<8x256xf32>
    %81 = arith.addf %79, %80 : vector<8x256xf32>
    %c0_41 = arith.constant 0 : index
    %c0_42 = arith.constant 0 : index
    %82 = vector.load %arg13[%c0_41, %c0_42] : memref<256x256xf32, #tpu.memory_space<vmem>>, vector<256x256xf32>
    %cst_43 = arith.constant dense<0.000000e+00> : vector<8x256xf32>
    %83 = tpu.matmul %81, %82, %cst_43 {dimension_numbers = #tpu.dot_dimension_numbers<[1], [0], [0], [1], [0, 0, 1, 1], [], []>} : vector<8x256xf32>, vector<256x256xf32>, vector<8x256xf32> -> vector<8x256xf32>
    %c0_44 = arith.constant 0 : index
    %c0_45 = arith.constant 0 : index
    %84 = vector.load %arg14[%c0_44, %c0_45] : memref<1x256xf32, #tpu.memory_space<vmem>>, vector<1x256xf32>
    %85 = vector.broadcast %84 : vector<1x256xf32> to vector<8x256xf32>
    %86 = arith.addf %83, %85 : vector<8x256xf32>
    %cst_46 = arith.constant 5.000000e-01 : f32
    %87 = vector.broadcast %cst_46 : f32 to vector<8x256xf32>
    %88 = arith.mulf %87, %86 : vector<8x256xf32>
    %cst_47 = arith.constant 1.41421354 : f32
    %89 = vector.broadcast %cst_47 : f32 to vector<8x256xf32>
    %90 = arith.divf %86, %89 : vector<8x256xf32>
    %91 = math.erf %90 : vector<8x256xf32>
    %cst_48 = arith.constant 1.000000e+00 : f32
    %92 = vector.broadcast %cst_48 : f32 to vector<8x256xf32>
    %93 = arith.addf %92, %91 : vector<8x256xf32>
    %94 = arith.mulf %88, %93 : vector<8x256xf32>
    %95 = arith.addf %94, %6 : vector<8x256xf32>
    %c0_49 = arith.constant 0 : index
    %c0_50 = arith.constant 0 : index
    %96 = vector.load %arg15[%c0_49, %c0_50] : memref<8x256xf32, #tpu.memory_space<vmem>>, vector<8x256xf32>
    tpu.vector_store %arg15[%c0_49, %c0_50], %95 {strides = array<i32>} : memref<8x256xf32, #tpu.memory_space<vmem>>, vector<8x256xf32>,
    return
  }
  func.func @transform_0(%arg0: i32) -> (i32, i32) {
    %c0_i32 = arith.constant 0 : i32
    %c0_i32_0 = arith.constant 0 : i32
    return %arg0, %c0_i32 : i32, i32
  }
  func.func @transform_1(%arg0: i32) -> (i32, i32) {
    %c0_i32 = arith.constant 0 : i32
    %c0_i32_0 = arith.constant 0 : i32
    return %arg0, %c0_i32 : i32, i32
  }
  func.func @transform_2(%arg0: i32) -> (i32, i32) {
    %c0_i32 = arith.constant 0 : i32
    %c0_i32_0 = arith.constant 0 : i32
    %c0_i32_1 = arith.constant 0 : i32
    return %c0_i32, %c0_i32_0 : i32, i32
  }
  func.func @transform_3(%arg0: i32) -> (i32, i32) {
    %c0_i32 = arith.constant 0 : i32
    %c0_i32_0 = arith.constant 0 : i32
    %c0_i32_1 = arith.constant 0 : i32
    return %c0_i32, %c0_i32_0 : i32, i32
  }
  func.func @transform_4(%arg0: i32) -> (i32, i32) {
    %c0_i32 = arith.constant 0 : i32
    %c0_i32_0 = arith.constant 0 : i32
    %c0_i32_1 = arith.constant 0 : i32
    return %c0_i32, %c0_i32_0 : i32, i32
  }
  func.func @transform_5(%arg0: i32) -> (i32, i32) {
    %c0_i32 = arith.constant 0 : i32
    %c0_i32_0 = arith.constant 0 : i32
    %c0_i32_1 = arith.constant 0 : i32
    return %c0_i32, %c0_i32_0 : i32, i32
  }
  func.func @transform_6(%arg0: i32) -> (i32, i32) {
    %c0_i32 = arith.constant 0 : i32
    %c0_i32_0 = arith.constant 0 : i32
    %c0_i32_1 = arith.constant 0 : i32
    return %c0_i32, %c0_i32_0 : i32, i32
  }
  func.func @transform_7(%arg0: i32) -> (i32, i32) {
    %c0_i32 = arith.constant 0 : i32
    %c0_i32_0 = arith.constant 0 : i32
    %c0_i32_1 = arith.constant 0 : i32
    return %c0_i32, %c0_i32_0 : i32, i32
  }
  func.func @transform_8(%arg0: i32) -> (i32, i32) {
    %c0_i32 = arith.constant 0 : i32
    %c0_i32_0 = arith.constant 0 : i32
    %c0_i32_1 = arith.constant 0 : i32
    return %c0_i32, %c0_i32_0 : i32, i32
  }
  func.func @transform_9(%arg0: i32) -> (i32, i32) {
    %c0_i32 = arith.constant 0 : i32
    %c0_i32_0 = arith.constant 0 : i32
    %c0_i32_1 = arith.constant 0 : i32
    return %c0_i32, %c0_i32_0 : i32, i32
  }
  func.func @transform_10(%arg0: i32) -> (i32, i32) {
    %c0_i32 = arith.constant 0 : i32
    %c0_i32_0 = arith.constant 0 : i32
    %c0_i32_1 = arith.constant 0 : i32
    return %c0_i32, %c0_i32_0 : i32, i32
  }
  func.func @transform_11(%arg0: i32) -> (i32, i32) {
    %c0_i32 = arith.constant 0 : i32
    %c0_i32_0 = arith.constant 0 : i32
    %c0_i32_1 = arith.constant 0 : i32
    return %c0_i32, %c0_i32_0 : i32, i32
  }
  func.func @transform_12(%arg0: i32) -> (i32, i32) {
    %c0_i32 = arith.constant 0 : i32
    %c0_i32_0 = arith.constant 0 : i32
    %c0_i32_1 = arith.constant 0 : i32
    return %c0_i32, %c0_i32_0 : i32, i32
  }
  func.func @transform_13(%arg0: i32) -> (i32, i32) {
    %c0_i32 = arith.constant 0 : i32
    %c0_i32_0 = arith.constant 0 : i32
    %c0_i32_1 = arith.constant 0 : i32
    return %c0_i32, %c0_i32_0 : i32, i32
  }
  func.func @transform_14(%arg0: i32) -> (i32, i32) {
    %c0_i32 = arith.constant 0 : i32
    %c0_i32_0 = arith.constant 0 : i32
    return %arg0, %c0_i32 : i32, i32
  }
}

module attributes {stable_mosaic.version = 11 : i64} {
  func.func @kernel(%arg0: i32, %arg1: memref<8x256xf32, #tpu.memory_space<vmem>>, %arg2: memref<8x128xf32, #tpu.memory_space<vmem>>, %arg3: memref<1x256xf32, #tpu.memory_space<vmem>>, %arg4: memref<1x256xf32, #tpu.memory_space<vmem>>, %arg5: memref<256x256xf32, #tpu.memory_space<vmem>>, %arg6: memref<1x256xf32, #tpu.memory_space<vmem>>, %arg7: memref<128x256xf32, #tpu.memory_space<vmem>>, %arg8: memref<1x256xf32, #tpu.memory_space<vmem>>, %arg9: memref<1x256xf32, #tpu.memory_space<vmem>>, %arg10: memref<1x256xf32, #tpu.memory_space<vmem>>, %arg11: memref<256x256xf32, #tpu.memory_space<vmem>>, %arg12: memref<1x256xf32, #tpu.memory_space<vmem>>, %arg13: memref<8x256xf32, #tpu.memory_space<vmem>>) attributes {dimension_semantics = [#tpu.dimension_semantics<parallel>], iteration_bounds = array<i64: 1>, scalar_prefetch = 0 : i64, scratch_operands = 0 : i64, tpu.core_type = #tpu.core_type<tc>, window_params = [{transform_indices = @transform_0, window_bounds = array<i64: 8, 256>}, {transform_indices = @transform_1, window_bounds = array<i64: 8, 128>}, {pipeline_mode = #tpu.pipeline_mode<synchronous>, transform_indices = @transform_2, window_bounds = array<i64: 1, 256>}, {pipeline_mode = #tpu.pipeline_mode<synchronous>, transform_indices = @transform_3, window_bounds = array<i64: 1, 256>}, {pipeline_mode = #tpu.pipeline_mode<synchronous>, transform_indices = @transform_4, window_bounds = array<i64: 256, 256>}, {pipeline_mode = #tpu.pipeline_mode<synchronous>, transform_indices = @transform_5, window_bounds = array<i64: 1, 256>}, {pipeline_mode = #tpu.pipeline_mode<synchronous>, transform_indices = @transform_6, window_bounds = array<i64: 128, 256>}, {pipeline_mode = #tpu.pipeline_mode<synchronous>, transform_indices = @transform_7, window_bounds = array<i64: 1, 256>}, {pipeline_mode = #tpu.pipeline_mode<synchronous>, transform_indices = @transform_8, window_bounds = array<i64: 1, 256>}, {pipeline_mode = #tpu.pipeline_mode<synchronous>, transform_indices = @transform_9, window_bounds = array<i64: 1, 256>}, {pipeline_mode = #tpu.pipeline_mode<synchronous>, transform_indices = @transform_10, window_bounds = array<i64: 256, 256>}, {pipeline_mode = #tpu.pipeline_mode<synchronous>, transform_indices = @transform_11, window_bounds = array<i64: 1, 256>}, {transform_indices = @transform_12, window_bounds = array<i64: 8, 256>}]} {
    %c0 = arith.constant 0 : index
    %c0_0 = arith.constant 0 : index
    %0 = vector.load %arg1[%c0, %c0_0] : memref<8x256xf32, #tpu.memory_space<vmem>>, vector<8x256xf32>
    %c0_1 = arith.constant 0 : index
    %c0_2 = arith.constant 0 : index
    %1 = vector.load %arg2[%c0_1, %c0_2] : memref<8x128xf32, #tpu.memory_space<vmem>>, vector<8x128xf32>
    %c0_3 = arith.constant 0 : index
    %c0_4 = arith.constant 0 : index
    %2 = vector.load %arg3[%c0_3, %c0_4] : memref<1x256xf32, #tpu.memory_space<vmem>>, vector<1x256xf32>
    %c0_5 = arith.constant 0 : index
    %c0_6 = arith.constant 0 : index
    %3 = vector.load %arg4[%c0_5, %c0_6] : memref<1x256xf32, #tpu.memory_space<vmem>>, vector<1x256xf32>
    %cst = arith.constant dense<0.000000e+00> : vector<8xf32>
    %4 = vector.multi_reduction <add>, %0, %cst [1] : vector<8x256xf32> to vector<8xf32>
    %5 = vector.shape_cast %4 : vector<8xf32> to vector<8x1xf32>
    %cst_7 = arith.constant 2.560000e+02 : f32
    %6 = vector.broadcast %cst_7 : f32 to vector<8x1xf32>
    %7 = arith.divf %5, %6 : vector<8x1xf32>
    %8 = vector.broadcast %7 : vector<8x1xf32> to vector<8x256xf32>
    %9 = arith.subf %0, %8 : vector<8x256xf32>
    %10 = arith.mulf %9, %9 : vector<8x256xf32>
    %cst_8 = arith.constant dense<0.000000e+00> : vector<8xf32>
    %11 = vector.multi_reduction <add>, %10, %cst_8 [1] : vector<8x256xf32> to vector<8xf32>
    %12 = vector.shape_cast %11 : vector<8xf32> to vector<8x1xf32>
    %cst_9 = arith.constant 2.560000e+02 : f32
    %13 = vector.broadcast %cst_9 : f32 to vector<8x1xf32>
    %14 = arith.divf %12, %13 : vector<8x1xf32>
    %15 = vector.broadcast %7 : vector<8x1xf32> to vector<8x256xf32>
    %16 = arith.subf %0, %15 : vector<8x256xf32>
    %cst_10 = arith.constant 9.99999974E-6 : f32
    %17 = vector.broadcast %cst_10 : f32 to vector<8x1xf32>
    %18 = arith.addf %14, %17 : vector<8x1xf32>
    %19 = math.rsqrt %18 : vector<8x1xf32>
    %20 = vector.broadcast %19 : vector<8x1xf32> to vector<8x256xf32>
    %21 = arith.mulf %16, %20 : vector<8x256xf32>
    %22 = vector.broadcast %2 : vector<1x256xf32> to vector<8x256xf32>
    %23 = arith.mulf %21, %22 : vector<8x256xf32>
    %24 = vector.broadcast %3 : vector<1x256xf32> to vector<8x256xf32>
    %25 = arith.addf %23, %24 : vector<8x256xf32>
    %c0_11 = arith.constant 0 : index
    %c0_12 = arith.constant 0 : index
    %26 = vector.load %arg5[%c0_11, %c0_12] : memref<256x256xf32, #tpu.memory_space<vmem>>, vector<256x256xf32>
    %cst_13 = arith.constant dense<0.000000e+00> : vector<8x256xf32>
    %27 = tpu.matmul %25, %26, %cst_13 {dimension_numbers = #tpu.dot_dimension_numbers<[1], [0], [0], [1], [0, 0, 1, 1], [], []>} : vector<8x256xf32>, vector<256x256xf32>, vector<8x256xf32> -> vector<8x256xf32>
    %c0_14 = arith.constant 0 : index
    %c0_15 = arith.constant 0 : index
    %28 = vector.load %arg6[%c0_14, %c0_15] : memref<1x256xf32, #tpu.memory_space<vmem>>, vector<1x256xf32>
    %29 = vector.broadcast %28 : vector<1x256xf32> to vector<8x256xf32>
    %30 = arith.addf %27, %29 : vector<8x256xf32>
    %cst_16 = arith.constant 5.000000e-01 : f32
    %31 = vector.broadcast %cst_16 : f32 to vector<8x256xf32>
    %32 = arith.mulf %31, %30 : vector<8x256xf32>
    %cst_17 = arith.constant 1.41421354 : f32
    %33 = vector.broadcast %cst_17 : f32 to vector<8x256xf32>
    %34 = arith.divf %30, %33 : vector<8x256xf32>
    %35 = math.erf %34 : vector<8x256xf32>
    %cst_18 = arith.constant 1.000000e+00 : f32
    %36 = vector.broadcast %cst_18 : f32 to vector<8x256xf32>
    %37 = arith.addf %36, %35 : vector<8x256xf32>
    %38 = arith.mulf %32, %37 : vector<8x256xf32>
    %c0_19 = arith.constant 0 : index
    %c0_20 = arith.constant 0 : index
    %39 = vector.load %arg7[%c0_19, %c0_20] : memref<128x256xf32, #tpu.memory_space<vmem>>, vector<128x256xf32>
    %cst_21 = arith.constant dense<0.000000e+00> : vector<8x256xf32>
    %40 = tpu.matmul %1, %39, %cst_21 {dimension_numbers = #tpu.dot_dimension_numbers<[1], [0], [0], [1], [0, 0, 1, 1], [], []>} : vector<8x128xf32>, vector<128x256xf32>, vector<8x256xf32> -> vector<8x256xf32>
    %c0_22 = arith.constant 0 : index
    %c0_23 = arith.constant 0 : index
    %41 = vector.load %arg8[%c0_22, %c0_23] : memref<1x256xf32, #tpu.memory_space<vmem>>, vector<1x256xf32>
    %42 = vector.broadcast %41 : vector<1x256xf32> to vector<8x256xf32>
    %43 = arith.addf %40, %42 : vector<8x256xf32>
    %cst_24 = arith.constant 5.000000e-01 : f32
    %44 = vector.broadcast %cst_24 : f32 to vector<8x256xf32>
    %45 = arith.mulf %44, %43 : vector<8x256xf32>
    %cst_25 = arith.constant 1.41421354 : f32
    %46 = vector.broadcast %cst_25 : f32 to vector<8x256xf32>
    %47 = arith.divf %43, %46 : vector<8x256xf32>
    %48 = math.erf %47 : vector<8x256xf32>
    %cst_26 = arith.constant 1.000000e+00 : f32
    %49 = vector.broadcast %cst_26 : f32 to vector<8x256xf32>
    %50 = arith.addf %49, %48 : vector<8x256xf32>
    %51 = arith.mulf %45, %50 : vector<8x256xf32>
    %52 = arith.addf %38, %51 : vector<8x256xf32>
    %c0_27 = arith.constant 0 : index
    %c0_28 = arith.constant 0 : index
    %53 = vector.load %arg9[%c0_27, %c0_28] : memref<1x256xf32, #tpu.memory_space<vmem>>, vector<1x256xf32>
    %c0_29 = arith.constant 0 : index
    %c0_30 = arith.constant 0 : index
    %54 = vector.load %arg10[%c0_29, %c0_30] : memref<1x256xf32, #tpu.memory_space<vmem>>, vector<1x256xf32>
    %cst_31 = arith.constant dense<0.000000e+00> : vector<8xf32>
    %55 = vector.multi_reduction <add>, %52, %cst_31 [1] : vector<8x256xf32> to vector<8xf32>
    %56 = vector.shape_cast %55 : vector<8xf32> to vector<8x1xf32>
    %cst_32 = arith.constant 2.560000e+02 : f32
    %57 = vector.broadcast %cst_32 : f32 to vector<8x1xf32>
    %58 = arith.divf %56, %57 : vector<8x1xf32>
    %59 = vector.broadcast %58 : vector<8x1xf32> to vector<8x256xf32>
    %60 = arith.subf %52, %59 : vector<8x256xf32>
    %61 = arith.mulf %60, %60 : vector<8x256xf32>
    %cst_33 = arith.constant dense<0.000000e+00> : vector<8xf32>
    %62 = vector.multi_reduction <add>, %61, %cst_33 [1] : vector<8x256xf32> to vector<8xf32>
    %63 = vector.shape_cast %62 : vector<8xf32> to vector<8x1xf32>
    %cst_34 = arith.constant 2.560000e+02 : f32
    %64 = vector.broadcast %cst_34 : f32 to vector<8x1xf32>
    %65 = arith.divf %63, %64 : vector<8x1xf32>
    %66 = vector.broadcast %58 : vector<8x1xf32> to vector<8x256xf32>
    %67 = arith.subf %52, %66 : vector<8x256xf32>
    %cst_35 = arith.constant 9.99999974E-6 : f32
    %68 = vector.broadcast %cst_35 : f32 to vector<8x1xf32>
    %69 = arith.addf %65, %68 : vector<8x1xf32>
    %70 = math.rsqrt %69 : vector<8x1xf32>
    %71 = vector.broadcast %70 : vector<8x1xf32> to vector<8x256xf32>
    %72 = arith.mulf %67, %71 : vector<8x256xf32>
    %73 = vector.broadcast %53 : vector<1x256xf32> to vector<8x256xf32>
    %74 = arith.mulf %72, %73 : vector<8x256xf32>
    %75 = vector.broadcast %54 : vector<1x256xf32> to vector<8x256xf32>
    %76 = arith.addf %74, %75 : vector<8x256xf32>
    %c0_36 = arith.constant 0 : index
    %c0_37 = arith.constant 0 : index
    %77 = vector.load %arg11[%c0_36, %c0_37] : memref<256x256xf32, #tpu.memory_space<vmem>>, vector<256x256xf32>
    %cst_38 = arith.constant dense<0.000000e+00> : vector<8x256xf32>
    %78 = tpu.matmul %76, %77, %cst_38 {dimension_numbers = #tpu.dot_dimension_numbers<[1], [0], [0], [1], [0, 0, 1, 1], [], []>} : vector<8x256xf32>, vector<256x256xf32>, vector<8x256xf32> -> vector<8x256xf32>
    %c0_39 = arith.constant 0 : index
    %c0_40 = arith.constant 0 : index
    %79 = vector.load %arg12[%c0_39, %c0_40] : memref<1x256xf32, #tpu.memory_space<vmem>>, vector<1x256xf32>
    %80 = vector.broadcast %79 : vector<1x256xf32> to vector<8x256xf32>
    %81 = arith.addf %78, %80 : vector<8x256xf32>
    %cst_41 = arith.constant 5.000000e-01 : f32
    %82 = vector.broadcast %cst_41 : f32 to vector<8x256xf32>
    %83 = arith.mulf %82, %81 : vector<8x256xf32>
    %cst_42 = arith.constant 1.41421354 : f32
    %84 = vector.broadcast %cst_42 : f32 to vector<8x256xf32>
    %85 = arith.divf %81, %84 : vector<8x256xf32>
    %86 = math.erf %85 : vector<8x256xf32>
    %cst_43 = arith.constant 1.000000e+00 : f32
    %87 = vector.broadcast %cst_43 : f32 to vector<8x256xf32>
    %88 = arith.addf %87, %86 : vector<8x256xf32>
    %89 = arith.mulf %83, %88 : vector<8x256xf32>
    %90 = arith.addf %89, %0 : vector<8x256xf32>
    %c0_44 = arith.constant 0 : index
    %c0_45 = arith.constant 0 : index
    %91 = vector.load %arg13[%c0_44, %c0_45] : memref<8x256xf32, #tpu.memory_space<vmem>>, vector<8x256xf32>
    tpu.vector_store %arg13[%c0_44, %c0_45], %90 {strides = array<i32>} : memref<8x256xf32, #tpu.memory_space<vmem>>, vector<8x256xf32>,
    return
  }
  func.func @transform_0(%arg0: i32) -> (i32, i32) {
    %c0_i32 = arith.constant 0 : i32
    %c0_i32_0 = arith.constant 0 : i32
    return %arg0, %c0_i32 : i32, i32
  }
  func.func @transform_1(%arg0: i32) -> (i32, i32) {
    %c0_i32 = arith.constant 0 : i32
    %c0_i32_0 = arith.constant 0 : i32
    return %arg0, %c0_i32 : i32, i32
  }
  func.func @transform_2(%arg0: i32) -> (i32, i32) {
    %c0_i32 = arith.constant 0 : i32
    %c0_i32_0 = arith.constant 0 : i32
    %c0_i32_1 = arith.constant 0 : i32
    return %c0_i32, %c0_i32_0 : i32, i32
  }
  func.func @transform_3(%arg0: i32) -> (i32, i32) {
    %c0_i32 = arith.constant 0 : i32
    %c0_i32_0 = arith.constant 0 : i32
    %c0_i32_1 = arith.constant 0 : i32
    return %c0_i32, %c0_i32_0 : i32, i32
  }
  func.func @transform_4(%arg0: i32) -> (i32, i32) {
    %c0_i32 = arith.constant 0 : i32
    %c0_i32_0 = arith.constant 0 : i32
    %c0_i32_1 = arith.constant 0 : i32
    return %c0_i32, %c0_i32_0 : i32, i32
  }
  func.func @transform_5(%arg0: i32) -> (i32, i32) {
    %c0_i32 = arith.constant 0 : i32
    %c0_i32_0 = arith.constant 0 : i32
    %c0_i32_1 = arith.constant 0 : i32
    return %c0_i32, %c0_i32_0 : i32, i32
  }
  func.func @transform_6(%arg0: i32) -> (i32, i32) {
    %c0_i32 = arith.constant 0 : i32
    %c0_i32_0 = arith.constant 0 : i32
    %c0_i32_1 = arith.constant 0 : i32
    return %c0_i32, %c0_i32_0 : i32, i32
  }
  func.func @transform_7(%arg0: i32) -> (i32, i32) {
    %c0_i32 = arith.constant 0 : i32
    %c0_i32_0 = arith.constant 0 : i32
    %c0_i32_1 = arith.constant 0 : i32
    return %c0_i32, %c0_i32_0 : i32, i32
  }
  func.func @transform_8(%arg0: i32) -> (i32, i32) {
    %c0_i32 = arith.constant 0 : i32
    %c0_i32_0 = arith.constant 0 : i32
    %c0_i32_1 = arith.constant 0 : i32
    return %c0_i32, %c0_i32_0 : i32, i32
  }
  func.func @transform_9(%arg0: i32) -> (i32, i32) {
    %c0_i32 = arith.constant 0 : i32
    %c0_i32_0 = arith.constant 0 : i32
    %c0_i32_1 = arith.constant 0 : i32
    return %c0_i32, %c0_i32_0 : i32, i32
  }
  func.func @transform_10(%arg0: i32) -> (i32, i32) {
    %c0_i32 = arith.constant 0 : i32
    %c0_i32_0 = arith.constant 0 : i32
    %c0_i32_1 = arith.constant 0 : i32
    return %c0_i32, %c0_i32_0 : i32, i32
  }
  func.func @transform_11(%arg0: i32) -> (i32, i32) {
    %c0_i32 = arith.constant 0 : i32
    %c0_i32_0 = arith.constant 0 : i32
    %c0_i32_1 = arith.constant 0 : i32
    return %c0_i32, %c0_i32_0 : i32, i32
  }
  func.func @transform_12(%arg0: i32) -> (i32, i32) {
    %c0_i32 = arith.constant 0 : i32
    %c0_i32_0 = arith.constant 0 : i32
    return %arg0, %c0_i32 : i32, i32
  }
}

</mosaic_0001>

<llo_original>
// kernel: _lambda_.3
$region0: #{_lambda_.3}
  #allocation0 [shape = 'u32[]', space=smem, size = 0x4, offset = 0x4, fixed_abs, tag = 'smem constant byte address 0x4 - core index']
  #allocation1 [shape = 'u32[144,128]{1,0:T(1,128)}', space=vmem, size = 0x12000, scoped, tag = 'internal scratch']
  %s0 = inlined_call_operand.vmem [shape: f32[8,256], index: 0, kind: input, shape index: {}]
  %s1 = inlined_call_operand.vmem [shape: f32[8,128], index: 1, kind: input, shape index: {}]
  %s2 = inlined_call_operand.vmem [shape: f32[1,256], index: 2, kind: input, shape index: {}]
  %s3 = inlined_call_operand.vmem [shape: f32[1,256], index: 3, kind: input, shape index: {}]
  %s4 = inlined_call_operand.vmem [shape: f32[256,256], index: 4, kind: input, shape index: {}]
  %s5 = inlined_call_operand.vmem [shape: f32[1,256], index: 5, kind: input, shape index: {}]
  %s6 = inlined_call_operand.vmem [shape: f32[128,256], index: 6, kind: input, shape index: {}]
  %s7 = inlined_call_operand.vmem [shape: f32[1,256], index: 7, kind: input, shape index: {}]
  %s8 = inlined_call_operand.vmem [shape: f32[1,256], index: 8, kind: input, shape index: {}]
  %s9 = inlined_call_operand.vmem [shape: f32[1,256], index: 9, kind: input, shape index: {}]
  %s10 = inlined_call_operand.vmem [shape: f32[256,256], index: 10, kind: input, shape index: {}]
  %s11 = inlined_call_operand.vmem [shape: f32[1,256], index: 11, kind: input, shape index: {}]
  %s12 = inlined_call_operand.hbm [shape: f32[8,256], index: 12, kind: output, shape index: {}]
  %s13 = sld [smem:[#allocation0]]
  $region58: #{_lambda_.3} parent=0
    _
  %s15 = ssub.s32 1, %s13
  %s16 = scalar_select 0, %s15, %s13
  $region1: #{_lambda_.3} parent=0
    #allocation2 [shape = 'u8[8192]{0}', space=vmem, size = 0x2000, scoped, tag = 'output window, operand 0, single buffered']
    #allocation3 [shape = 's32[1]{0}', space=sflag, size = 0x4, scoped, tag = 'scoped memory for _lambda_.3']
    %17 = vsyncpa [#allocation3], 0
    // Predicated region
    $region2: #{_lambda_.3} parent=1 // pred_check
      _
    $region3: #{_lambda_.3} parent=1 // pred_check_branch
      %19 = sbr.rel (0) target = $region5
    $region4: #{_lambda_.3} parent=1 // pred_region
      _
    $region5: #{_lambda_.3} parent=1 // pred_fallthru
      _
    // Predicated region
    $region6: #{_lambda_.3} parent=1 // pred_check
      _
    $region7: #{_lambda_.3} parent=1 // pred_check_branch
      %21 = sbr.rel (0) target = $region9
    $region8: #{_lambda_.3} parent=1 // pred_region
      _
    $region9: #{_lambda_.3} parent=1 // pred_fallthru
      _
    // Predicated region
    $region10: #{_lambda_.3} parent=1 // pred_check
      _
    $region11: #{_lambda_.3} parent=1 // pred_check_branch
      %23 = sbr.rel (0) target = $region13
    $region12: #{_lambda_.3} parent=1 // pred_region
      _
    $region13: #{_lambda_.3} parent=1 // pred_fallthru
      _
    // Predicated region
    $region14: #{_lambda_.3} parent=1 // pred_check
      _
    $region15: #{_lambda_.3} parent=1 // pred_check_branch
      %25 = sbr.rel (0) target = $region17
    $region16: #{_lambda_.3} parent=1 // pred_region
      _
    $region17: #{_lambda_.3} parent=1 // pred_fallthru
      _
    // Predicated region
    $region18: #{_lambda_.3} parent=1 // pred_check
      _
    $region19: #{_lambda_.3} parent=1 // pred_check_branch
      %27 = sbr.rel (0) target = $region21
    $region20: #{_lambda_.3} parent=1 // pred_region
      _
    $region21: #{_lambda_.3} parent=1 // pred_fallthru
      _
    // Predicated region
    $region22: #{_lambda_.3} parent=1 // pred_check
      _
    $region23: #{_lambda_.3} parent=1 // pred_check_branch
      %29 = sbr.rel (0) target = $region25
    $region24: #{_lambda_.3} parent=1 // pred_region
      _
    $region25: #{_lambda_.3} parent=1 // pred_fallthru
      _
    // Predicated region
    $region26: #{_lambda_.3} parent=1 // pred_check
      _
    $region27: #{_lambda_.3} parent=1 // pred_check_branch
      %31 = sbr.rel (0) target = $region29
    $region28: #{_lambda_.3} parent=1 // pred_region
      _
    $region29: #{_lambda_.3} parent=1 // pred_fallthru
      _
    // Predicated region
    $region30: #{_lambda_.3} parent=1 // pred_check
      _
    $region31: #{_lambda_.3} parent=1 // pred_check_branch
      %33 = sbr.rel (0) target = $region33
    $region32: #{_lambda_.3} parent=1 // pred_region
      _
    $region33: #{_lambda_.3} parent=1 // pred_fallthru
      _
    // Predicated region
    $region34: #{_lambda_.3} parent=1 // pred_check
      _
    $region35: #{_lambda_.3} parent=1 // pred_check_branch
      %35 = sbr.rel (0) target = $region37
    $region36: #{_lambda_.3} parent=1 // pred_region
      _
    $region37: #{_lambda_.3} parent=1 // pred_fallthru
      _
    // Predicated region
    $region38: #{_lambda_.3} parent=1 // pred_check
      _
    $region39: #{_lambda_.3} parent=1 // pred_check_branch
      %37 = sbr.rel (0) target = $region41
    $region40: #{_lambda_.3} parent=1 // pred_region
      _
    $region41: #{_lambda_.3} parent=1 // pred_fallthru
      _
    // Predicated region
    $region42: #{_lambda_.3} parent=1 // pred_check
      _
    $region43: #{_lambda_.3} parent=1 // pred_check_branch
      %39 = sbr.rel (0) target = $region45
    $region44: #{_lambda_.3} parent=1 // pred_region
      _
    $region45: #{_lambda_.3} parent=1 // pred_fallthru
      _
    // Predicated region
    $region46: #{_lambda_.3} parent=1 // pred_check
      _
    $region47: #{_lambda_.3} parent=1 // pred_check_branch
      %41 = sbr.rel (0) target = $region49
    $region48: #{_lambda_.3} parent=1 // pred_region
      _
    $region49: #{_lambda_.3} parent=1 // pred_fallthru
      _
    %v42 = vld [vmem:[%s0] sm:$0xff]
    %v43 = vld [vmem:[%s0 + $0x8] sm:$0xff]
    %v44 = vld [vmem:[%s1] sm:$0xff]
    %v45 = vld [vmem:[%s2] sm:$0x3]
    %v46 = vld [vmem:[%s3] sm:$0x3]
    %v47 = vadd.f32 %v42, %v43
    %48 = vadd.xlane.f32.xlu0 %v47
    %v49 = vpop.xlane.xlu0 %48
    %v50 = vrcp.pop 256.0
    %v51 = vmul.f32 %v49, %v50
    %v52 = vsub.f32 %v42, %v51
    %v53 = vsub.f32 %v43, %v51
    %v54 = vmul.f32 %v52, %v52
    %v55 = vmul.f32 %v53, %v53
    %v56 = vadd.f32 %v54, %v55
    %57 = vadd.xlane.f32.xlu0 %v56
    %v58 = vpop.xlane.xlu0 %57
    %v59 = vmul.f32 %v58, %v50
    %v60 = vadd.f32 %v59, 1e-05
    %v61 = vrsqrt.pop %v60
    %v62 = vmul.f32 %v52, %v61
    %v63 = vmul.f32 %v53, %v61
    %v65 = vlaneseq
    %v66 = vshrl.u32 %v65, 7
    %v67 = vsub.s32 0, %v66
    %v68 = vrot.slane %v45, %v67
    %v69 = vlaneseq
    %v70 = vshrl.u32 %v69, 7
    %v71 = vsub.s32 1, %v70
    %v72 = vrot.slane %v45, %v71
    %v75 = vmul.f32 %v62, %v68
    %v76 = vmul.f32 %v63, %v72
    %v78 = vlaneseq
    %v79 = vshrl.u32 %v78, 7
    %v80 = vsub.s32 0, %v79
    %v81 = vrot.slane %v46, %v80
    %v82 = vlaneseq
    %v83 = vshrl.u32 %v82, 7
    %v84 = vsub.s32 1, %v83
    %v85 = vrot.slane %v46, %v84
    %v88 = vadd.f32 %v75, %v81
    %v89 = vadd.f32 %v76, %v85
    %v90 = vld [vmem:[%s4] sm:$0xff]
    %v91 = vld [vmem:[%s4 + $0x8] sm:$0xff]
    %v92 = vld [vmem:[%s4 + $0x10] sm:$0xff]
    %v93 = vld [vmem:[%s4 + $0x18] sm:$0xff]
    %v94 = vld [vmem:[%s4 + $0x20] sm:$0xff]
    %v95 = vld [vmem:[%s4 + $0x28] sm:$0xff]
    %v96 = vld [vmem:[%s4 + $0x30] sm:$0xff]
    %v97 = vld [vmem:[%s4 + $0x38] sm:$0xff]
    %v98 = vld [vmem:[%s4 + $0x40] sm:$0xff]
    %v99 = vld [vmem:[%s4 + $0x48] sm:$0xff]
    %v100 = vld [vmem:[%s4 + $0x50] sm:$0xff]
    %v101 = vld [vmem:[%s4 + $0x58] sm:$0xff]
    %v102 = vld [vmem:[%s4 + $0x60] sm:$0xff]
    %v103 = vld [vmem:[%s4 + $0x68] sm:$0xff]
    %v104 = vld [vmem:[%s4 + $0x70] sm:$0xff]
    %v105 = vld [vmem:[%s4 + $0x78] sm:$0xff]
    %v106 = vld [vmem:[%s4 + $0x80] sm:$0xff]
    %v107 = vld [vmem:[%s4 + $0x88] sm:$0xff]
    %v108 = vld [vmem:[%s4 + $0x90] sm:$0xff]
    %v109 = vld [vmem:[%s4 + $0x98] sm:$0xff]
    %v110 = vld [vmem:[%s4 + $0xa0] sm:$0xff]
    %v111 = vld [vmem:[%s4 + $0xa8] sm:$0xff]
    %v112 = vld [vmem:[%s4 + $0xb0] sm:$0xff]
    %v113 = vld [vmem:[%s4 + $0xb8] sm:$0xff]
    %v114 = vld [vmem:[%s4 + $0xc0] sm:$0xff]
    %v115 = vld [vmem:[%s4 + $0xc8] sm:$0xff]
    %v116 = vld [vmem:[%s4 + $0xd0] sm:$0xff]
    %v117 = vld [vmem:[%s4 + $0xd8] sm:$0xff]
    %v118 = vld [vmem:[%s4 + $0xe0] sm:$0xff]
    %v119 = vld [vmem:[%s4 + $0xe8] sm:$0xff]
    %v120 = vld [vmem:[%s4 + $0xf0] sm:$0xff]
    %v121 = vld [vmem:[%s4 + $0xf8] sm:$0xff]
    %v122 = vld [vmem:[%s4 + $0x100] sm:$0xff]
    %v123 = vld [vmem:[%s4 + $0x108] sm:$0xff]
    %v124 = vld [vmem:[%s4 + $0x110] sm:$0xff]
    %v125 = vld [vmem:[%s4 + $0x118] sm:$0xff]
    %v126 = vld [vmem:[%s4 + $0x120] sm:$0xff]
    %v127 = vld [vmem:[%s4 + $0x128] sm:$0xff]
    %v128 = vld [vmem:[%s4 + $0x130] sm:$0xff]
    %v129 = vld [vmem:[%s4 + $0x138] sm:$0xff]
    %v130 = vld [vmem:[%s4 + $0x140] sm:$0xff]
    %v131 = vld [vmem:[%s4 + $0x148] sm:$0xff]
    %v132 = vld [vmem:[%s4 + $0x150] sm:$0xff]
    %v133 = vld [vmem:[%s4 + $0x158] sm:$0xff]
    %v134 = vld [vmem:[%s4 + $0x160] sm:$0xff]
    %v135 = vld [vmem:[%s4 + $0x168] sm:$0xff]
    %v136 = vld [vmem:[%s4 + $0x170] sm:$0xff]
    %v137 = vld [vmem:[%s4 + $0x178] sm:$0xff]
    %v138 = vld [vmem:[%s4 + $0x180] sm:$0xff]
    %v139 = vld [vmem:[%s4 + $0x188] sm:$0xff]
    %v140 = vld [vmem:[%s4 + $0x190] sm:$0xff]
    %v141 = vld [vmem:[%s4 + $0x198] sm:$0xff]
    %v142 = vld [vmem:[%s4 + $0x1a0] sm:$0xff]
    %v143 = vld [vmem:[%s4 + $0x1a8] sm:$0xff]
    %v144 = vld [vmem:[%s4 + $0x1b0] sm:$0xff]
    %v145 = vld [vmem:[%s4 + $0x1b8] sm:$0xff]
    %v146 = vld [vmem:[%s4 + $0x1c0] sm:$0xff]
    %v147 = vld [vmem:[%s4 + $0x1c8] sm:$0xff]
    %v148 = vld [vmem:[%s4 + $0x1d0] sm:$0xff]
    %v149 = vld [vmem:[%s4 + $0x1d8] sm:$0xff]
    %v150 = vld [vmem:[%s4 + $0x1e0] sm:$0xff]
    %v151 = vld [vmem:[%s4 + $0x1e8] sm:$0xff]
    %v152 = vld [vmem:[%s4 + $0x1f0] sm:$0xff]
    %v153 = vld [vmem:[%s4 + $0x1f8] sm:$0xff]
    %v154 = vld [vmem:[%s5] sm:$0x3]
    %v156 = vlaneseq
    %v157 = vshrl.u32 %v156, 7
    %v158 = vsub.s32 0, %v157
    %v159 = vrot.slane %v154, %v158
    %v160 = vlaneseq
    %v161 = vshrl.u32 %v160, 7
    %v162 = vsub.s32 1, %v161
    %v163 = vrot.slane %v154, %v162
    %166 = vmatprep.subr.mxu0 %v91
    %167 = vmatpush1.msra.mxu0 %v90
    %168 = vmatprep.subr.mxu0 %v93
    %169 = vmatpush1.msra.mxu0 %v92
    %170 = vmatprep.subr.mxu0 %v95
    %171 = vmatpush1.msra.mxu0 %v94
    %172 = vmatprep.subr.mxu0 %v97
    %173 = vmatpush1.msra.mxu0 %v96
    %174 = vmatprep.subr.mxu0 %v99
    %175 = vmatpush1.msra.mxu0 %v98
    %176 = vmatprep.subr.mxu0 %v101
    %177 = vmatpush1.msra.mxu0 %v100
    %178 = vmatprep.subr.mxu0 %v103
    %179 = vmatpush1.msra.mxu0 %v102
    %180 = vmatprep.subr.mxu0 %v105
    %181 = vmatpush1.msra.mxu0 %v104
    %182 = vmatprep.subr.mxu0 %v107
    %183 = vmatpush1.msra.mxu0 %v106
    %184 = vmatprep.subr.mxu0 %v109
    %185 = vmatpush1.msra.mxu0 %v108
    %186 = vmatprep.subr.mxu0 %v111
    %187 = vmatpush1.msra.mxu0 %v110
    %188 = vmatprep.subr.mxu0 %v113
    %189 = vmatpush1.msra.mxu0 %v112
    %190 = vmatprep.subr.mxu0 %v115
    %191 = vmatpush1.msra.mxu0 %v114
    %192 = vmatprep.subr.mxu0 %v117
    %193 = vmatpush1.msra.mxu0 %v116
    %194 = vmatprep.subr.mxu0 %v119
    %195 = vmatpush1.msra.mxu0 %v118
    %196 = vmatprep.subr.mxu0 %v121
    %197 = vmatpush1.msra.mxu0 %v120
    %198 = vmatprep.subr.mxu0 %v123
    %199 = vmatpush1.msra.mxu0 %v122
    %200 = vmatprep.subr.mxu0 %v125
    %201 = vmatpush1.msra.mxu0 %v124
    %202 = vmatprep.subr.mxu0 %v127
    %203 = vmatpush1.msra.mxu0 %v126
    %204 = vmatprep.subr.mxu0 %v129
    %205 = vmatpush1.msra.mxu0 %v128
    %206 = vmatprep.subr.mxu0 %v131
    %207 = vmatpush1.msra.mxu0 %v130
    %208 = vmatprep.subr.mxu0 %v133
    %209 = vmatpush1.msra.mxu0 %v132
    %210 = vmatprep.subr.mxu0 %v135
    %211 = vmatpush1.msra.mxu0 %v134
    %212 = vmatprep.subr.mxu0 %v137
    %213 = vmatpush1.msra.mxu0 %v136
    %214 = vmatprep.subr.mxu0 %v139
    %215 = vmatpush1.msra.mxu0 %v138
    %216 = vmatprep.subr.mxu0 %v141
    %217 = vmatpush1.msra.mxu0 %v140
    %218 = vmatprep.subr.mxu0 %v143
    %219 = vmatpush1.msra.mxu0 %v142
    %220 = vmatprep.subr.mxu0 %v145
    %221 = vmatpush1.msra.mxu0 %v144
    %222 = vmatprep.subr.mxu0 %v147
    %223 = vmatpush1.msra.mxu0 %v146
    %224 = vmatprep.subr.mxu0 %v149
    %225 = vmatpush1.msra.mxu0 %v148
    %226 = vmatprep.subr.mxu0 %v151
    %227 = vmatpush1.msra.mxu0 %v150
    %228 = vmatprep.subr.mxu0 %v153
    %229 = vmatpush1.msra.mxu0 %v152
    %230 = vmatprep.mubr.f32.mxu0 %v89
    %231 = vmatmul.mubr.f32.gmra.mrb[0].mxu0 %v88
    %v232 = vpop.f32.mrb[0].mxu0
    %v233 = vadd.f32 %v159, %v232
    %v234 = vpop.f32.mrb[0].mxu0
    %v235 = vadd.f32 %v163, %v234
    %236 = vdwg.mxu0
    %v237 = vmul.f32 %v233, 0.5
    %v238 = vmul.f32 %v235, 0.5
    %v239 = vrcp.pop 1.4142135
    %v240 = vmul.f32 %v233, %v239
    %v241 = vmul.f32 %v235, %v239
    %v242 = verf.f32.pop %v240
    %v243 = verf.f32.pop %v241
    %v244 = vadd.f32 %v242, 1.0
    %v245 = vadd.f32 %v243, 1.0
    %v246 = vmul.f32 %v237, %v244
    %v247 = vmul.f32 %v238, %v245
    %v248 = vld [vmem:[%s6] sm:$0xff]
    %v249 = vld [vmem:[%s6 + $0x8] sm:$0xff]
    %v250 = vld [vmem:[%s6 + $0x10] sm:$0xff]
    %v251 = vld [vmem:[%s6 + $0x18] sm:$0xff]
    %v252 = vld [vmem:[%s6 + $0x20] sm:$0xff]
    %v253 = vld [vmem:[%s6 + $0x28] sm:$0xff]
    %v254 = vld [vmem:[%s6 + $0x30] sm:$0xff]
    %v255 = vld [vmem:[%s6 + $0x38] sm:$0xff]
    %v256 = vld [vmem:[%s6 + $0x40] sm:$0xff]
    %v257 = vld [vmem:[%s6 + $0x48] sm:$0xff]
    %v258 = vld [vmem:[%s6 + $0x50] sm:$0xff]
    %v259 = vld [vmem:[%s6 + $0x58] sm:$0xff]
    %v260 = vld [vmem:[%s6 + $0x60] sm:$0xff]
    %v261 = vld [vmem:[%s6 + $0x68] sm:$0xff]
    %v262 = vld [vmem:[%s6 + $0x70] sm:$0xff]
    %v263 = vld [vmem:[%s6 + $0x78] sm:$0xff]
    %v264 = vld [vmem:[%s6 + $0x80] sm:$0xff]
    %v265 = vld [vmem:[%s6 + $0x88] sm:$0xff]
    %v266 = vld [vmem:[%s6 + $0x90] sm:$0xff]
    %v267 = vld [vmem:[%s6 + $0x98] sm:$0xff]
    %v268 = vld [vmem:[%s6 + $0xa0] sm:$0xff]
    %v269 = vld [vmem:[%s6 + $0xa8] sm:$0xff]
    %v270 = vld [vmem:[%s6 + $0xb0] sm:$0xff]
    %v271 = vld [vmem:[%s6 + $0xb8] sm:$0xff]
    %v272 = vld [vmem:[%s6 + $0xc0] sm:$0xff]
    %v273 = vld [vmem:[%s6 + $0xc8] sm:$0xff]
    %v274 = vld [vmem:[%s6 + $0xd0] sm:$0xff]
    %v275 = vld [vmem:[%s6 + $0xd8] sm:$0xff]
    %v276 = vld [vmem:[%s6 + $0xe0] sm:$0xff]
    %v277 = vld [vmem:[%s6 + $0xe8] sm:$0xff]
    %v278 = vld [vmem:[%s6 + $0xf0] sm:$0xff]
    %v279 = vld [vmem:[%s6 + $0xf8] sm:$0xff]
    %v280 = vld [vmem:[%s7] sm:$0x3]
    %v282 = vlaneseq
    %v283 = vshrl.u32 %v282, 7
    %v284 = vsub.s32 0, %v283
    %v285 = vrot.slane %v280, %v284
    %v286 = vlaneseq
    %v287 = vshrl.u32 %v286, 7
    %v288 = vsub.s32 1, %v287
    %v289 = vrot.slane %v280, %v288
    %292 = vmatprep.subr.mxu0 %v249
    %293 = vmatpush1.msra.mxu0 %v248
    %294 = vmatprep.subr.mxu0 %v251
    %295 = vmatpush1.msra.mxu0 %v250
    %296 = vmatprep.subr.mxu0 %v253
    %297 = vmatpush1.msra.mxu0 %v252
    %298 = vmatprep.subr.mxu0 %v255
    %299 = vmatpush1.msra.mxu0 %v254
    %300 = vmatprep.subr.mxu0 %v257
    %301 = vmatpush1.msra.mxu0 %v256
    %302 = vmatprep.subr.mxu0 %v259
    %303 = vmatpush1.msra.mxu0 %v258
    %304 = vmatprep.subr.mxu0 %v261
    %305 = vmatpush1.msra.mxu0 %v260
    %306 = vmatprep.subr.mxu0 %v263
    %307 = vmatpush1.msra.mxu0 %v262
    %308 = vmatprep.subr.mxu0 %v265
    %309 = vmatpush1.msra.mxu0 %v264
    %310 = vmatprep.subr.mxu0 %v267
    %311 = vmatpush1.msra.mxu0 %v266
    %312 = vmatprep.subr.mxu0 %v269
    %313 = vmatpush1.msra.mxu0 %v268
    %314 = vmatprep.subr.mxu0 %v271
    %315 = vmatpush1.msra.mxu0 %v270
    %316 = vmatprep.subr.mxu0 %v273
    %317 = vmatpush1.msra.mxu0 %v272
    %318 = vmatprep.subr.mxu0 %v275
    %319 = vmatpush1.msra.mxu0 %v274
    %320 = vmatprep.subr.mxu0 %v277
    %321 = vmatpush1.msra.mxu0 %v276
    %322 = vmatprep.subr.mxu0 %v279
    %323 = vmatpush1.msra.mxu0 %v278
    %324 = vmatprep.subr.mxu0 0.0
    %325 = vmatpush1.msra.mxu0 0.0
    %326 = vmatprep.subr.mxu0 0.0
    %327 = vmatpush1.msra.mxu0 0.0
    %328 = vmatprep.subr.mxu0 0.0
    %329 = vmatpush1.msra.mxu0 0.0
    %330 = vmatprep.subr.mxu0 0.0
    %331 = vmatpush1.msra.mxu0 0.0
    %332 = vmatprep.subr.mxu0 0.0
    %333 = vmatpush1.msra.mxu0 0.0
    %334 = vmatprep.subr.mxu0 0.0
    %335 = vmatpush1.msra.mxu0 0.0
    %336 = vmatprep.subr.mxu0 0.0
    %337 = vmatpush1.msra.mxu0 0.0
    %338 = vmatprep.subr.mxu0 0.0
    %339 = vmatpush1.msra.mxu0 0.0
    %340 = vmatprep.subr.mxu0 0.0
    %341 = vmatpush1.msra.mxu0 0.0
    %342 = vmatprep.subr.mxu0 0.0
    %343 = vmatpush1.msra.mxu0 0.0
    %344 = vmatprep.subr.mxu0 0.0
    %345 = vmatpush1.msra.mxu0 0.0
    %346 = vmatprep.subr.mxu0 0.0
    %347 = vmatpush1.msra.mxu0 0.0
    %348 = vmatprep.subr.mxu0 0.0
    %349 = vmatpush1.msra.mxu0 0.0
    %350 = vmatprep.subr.mxu0 0.0
    %351 = vmatpush1.msra.mxu0 0.0
    %352 = vmatprep.subr.mxu0 0.0
    %353 = vmatpush1.msra.mxu0 0.0
    %354 = vmatprep.subr.mxu0 0.0
    %355 = vmatpush1.msra.mxu0 0.0
    %356 = vmatprep.mubr.f32.mxu0 0.0
    %357 = vmatmul.mubr.f32.gmra.mrb[0].mxu0 %v44
    %v358 = vpop.f32.mrb[0].mxu0
    %v359 = vadd.f32 %v285, %v358
    %v360 = vpop.f32.mrb[0].mxu0
    %v361 = vadd.f32 %v289, %v360
    %362 = vdwg.mxu0
    %v363 = vmul.f32 %v359, 0.5
    %v364 = vmul.f32 %v361, 0.5
    %v365 = vmul.f32 %v359, %v239
    %v366 = vmul.f32 %v361, %v239
    %v367 = verf.f32.pop %v365
    %v368 = verf.f32.pop %v366
    %v369 = vadd.f32 %v367, 1.0
    %v370 = vadd.f32 %v368, 1.0
    %v371 = vmul.f32 %v363, %v369
    %v372 = vmul.f32 %v364, %v370
    %v373 = vadd.f32 %v246, %v371
    %v374 = vadd.f32 %v247, %v372
    %v375 = vld [vmem:[%s8] sm:$0x3]
    %v376 = vld [vmem:[%s9] sm:$0x3]
    %v377 = vadd.f32 %v373, %v374
    %378 = vadd.xlane.f32.xlu0 %v377
    %v379 = vpop.xlane.xlu0 %378
    %v380 = vmul.f32 %v379, %v50
    %v381 = vsub.f32 %v373, %v380
    %v382 = vsub.f32 %v374, %v380
    %v383 = vmul.f32 %v381, %v381
    %v384 = vmul.f32 %v382, %v382
    %v385 = vadd.f32 %v383, %v384
    %386 = vadd.xlane.f32.xlu0 %v385
    %v387 = vpop.xlane.xlu0 %386
    %v388 = vmul.f32 %v387, %v50
    %v389 = vadd.f32 %v388, 1e-05
    %v390 = vrsqrt.pop %v389
    %v391 = vmul.f32 %v381, %v390
    %v392 = vmul.f32 %v382, %v390
    %v394 = vlaneseq
    %v395 = vshrl.u32 %v394, 7
    %v396 = vsub.s32 0, %v395
    %v397 = vrot.slane %v375, %v396
    %v398 = vlaneseq
    %v399 = vshrl.u32 %v398, 7
    %v400 = vsub.s32 1, %v399
    %v401 = vrot.slane %v375, %v400
    %v404 = vmul.f32 %v391, %v397
    %v405 = vmul.f32 %v392, %v401
    %v407 = vlaneseq
    %v408 = vshrl.u32 %v407, 7
    %v409 = vsub.s32 0, %v408
    %v410 = vrot.slane %v376, %v409
    %v411 = vlaneseq
    %v412 = vshrl.u32 %v411, 7
    %v413 = vsub.s32 1, %v412
    %v414 = vrot.slane %v376, %v413
    %v417 = vadd.f32 %v404, %v410
    %v418 = vadd.f32 %v405, %v414
    %v419 = vld [vmem:[%s10] sm:$0xff]
    %v420 = vld [vmem:[%s10 + $0x8] sm:$0xff]
    %v421 = vld [vmem:[%s10 + $0x10] sm:$0xff]
    %v422 = vld [vmem:[%s10 + $0x18] sm:$0xff]
    %v423 = vld [vmem:[%s10 + $0x20] sm:$0xff]
    %v424 = vld [vmem:[%s10 + $0x28] sm:$0xff]
    %v425 = vld [vmem:[%s10 + $0x30] sm:$0xff]
    %v426 = vld [vmem:[%s10 + $0x38] sm:$0xff]
    %v427 = vld [vmem:[%s10 + $0x40] sm:$0xff]
    %v428 = vld [vmem:[%s10 + $0x48] sm:$0xff]
    %v429 = vld [vmem:[%s10 + $0x50] sm:$0xff]
    %v430 = vld [vmem:[%s10 + $0x58] sm:$0xff]
    %v431 = vld [vmem:[%s10 + $0x60] sm:$0xff]
    %v432 = vld [vmem:[%s10 + $0x68] sm:$0xff]
    %v433 = vld [vmem:[%s10 + $0x70] sm:$0xff]
    %v434 = vld [vmem:[%s10 + $0x78] sm:$0xff]
    %v435 = vld [vmem:[%s10 + $0x80] sm:$0xff]
    %v436 = vld [vmem:[%s10 + $0x88] sm:$0xff]
    %v437 = vld [vmem:[%s10 + $0x90] sm:$0xff]
    %v438 = vld [vmem:[%s10 + $0x98] sm:$0xff]
    %v439 = vld [vmem:[%s10 + $0xa0] sm:$0xff]
    %v440 = vld [vmem:[%s10 + $0xa8] sm:$0xff]
    %v441 = vld [vmem:[%s10 + $0xb0] sm:$0xff]
    %v442 = vld [vmem:[%s10 + $0xb8] sm:$0xff]
    %v443 = vld [vmem:[%s10 + $0xc0] sm:$0xff]
    %v444 = vld [vmem:[%s10 + $0xc8] sm:$0xff]
    %v445 = vld [vmem:[%s10 + $0xd0] sm:$0xff]
    %v446 = vld [vmem:[%s10 + $0xd8] sm:$0xff]
    %v447 = vld [vmem:[%s10 + $0xe0] sm:$0xff]
    %v448 = vld [vmem:[%s10 + $0xe8] sm:$0xff]
    %v449 = vld [vmem:[%s10 + $0xf0] sm:$0xff]
    %v450 = vld [vmem:[%s10 + $0xf8] sm:$0xff]
    %v451 = vld [vmem:[%s10 + $0x100] sm:$0xff]
    %v452 = vld [vmem:[%s10 + $0x108] sm:$0xff]
    %v453 = vld [vmem:[%s10 + $0x110] sm:$0xff]
    %v454 = vld [vmem:[%s10 + $0x118] sm:$0xff]
    %v455 = vld [vmem:[%s10 + $0x120] sm:$0xff]
    %v456 = vld [vmem:[%s10 + $0x128] sm:$0xff]
    %v457 = vld [vmem:[%s10 + $0x130] sm:$0xff]
    %v458 = vld [vmem:[%s10 + $0x138] sm:$0xff]
    %v459 = vld [vmem:[%s10 + $0x140] sm:$0xff]
    %v460 = vld [vmem:[%s10 + $0x148] sm:$0xff]
    %v461 = vld [vmem:[%s10 + $0x150] sm:$0xff]
    %v462 = vld [vmem:[%s10 + $0x158] sm:$0xff]
    %v463 = vld [vmem:[%s10 + $0x160] sm:$0xff]
    %v464 = vld [vmem:[%s10 + $0x168] sm:$0xff]
    %v465 = vld [vmem:[%s10 + $0x170] sm:$0xff]
    %v466 = vld [vmem:[%s10 + $0x178] sm:$0xff]
    %v467 = vld [vmem:[%s10 + $0x180] sm:$0xff]
    %v468 = vld [vmem:[%s10 + $0x188] sm:$0xff]
    %v469 = vld [vmem:[%s10 + $0x190] sm:$0xff]
    %v470 = vld [vmem:[%s10 + $0x198] sm:$0xff]
    %v471 = vld [vmem:[%s10 + $0x1a0] sm:$0xff]
    %v472 = vld [vmem:[%s10 + $0x1a8] sm:$0xff]
    %v473 = vld [vmem:[%s10 + $0x1b0] sm:$0xff]
    %v474 = vld [vmem:[%s10 + $0x1b8] sm:$0xff]
    %v475 = vld [vmem:[%s10 + $0x1c0] sm:$0xff]
    %v476 = vld [vmem:[%s10 + $0x1c8] sm:$0xff]
    %v477 = vld [vmem:[%s10 + $0x1d0] sm:$0xff]
    %v478 = vld [vmem:[%s10 + $0x1d8] sm:$0xff]
    %v479 = vld [vmem:[%s10 + $0x1e0] sm:$0xff]
    %v480 = vld [vmem:[%s10 + $0x1e8] sm:$0xff]
    %v481 = vld [vmem:[%s10 + $0x1f0] sm:$0xff]
    %v482 = vld [vmem:[%s10 + $0x1f8] sm:$0xff]
    %v483 = vld [vmem:[%s11] sm:$0x3]
    %v485 = vlaneseq
    %v486 = vshrl.u32 %v485, 7
    %v487 = vsub.s32 0, %v486
    %v488 = vrot.slane %v483, %v487
    %v489 = vlaneseq
    %v490 = vshrl.u32 %v489, 7
    %v491 = vsub.s32 1, %v490
    %v492 = vrot.slane %v483, %v491
    %495 = vmatprep.subr.mxu0 %v420
    %496 = vmatpush1.msra.mxu0 %v419
    %497 = vmatprep.subr.mxu0 %v422
    %498 = vmatpush1.msra.mxu0 %v421
    %499 = vmatprep.subr.mxu0 %v424
    %500 = vmatpush1.msra.mxu0 %v423
    %501 = vmatprep.subr.mxu0 %v426
    %502 = vmatpush1.msra.mxu0 %v425
    %503 = vmatprep.subr.mxu0 %v428
    %504 = vmatpush1.msra.mxu0 %v427
    %505 = vmatprep.subr.mxu0 %v430
    %506 = vmatpush1.msra.mxu0 %v429
    %507 = vmatprep.subr.mxu0 %v432
    %508 = vmatpush1.msra.mxu0 %v431
    %509 = vmatprep.subr.mxu0 %v434
    %510 = vmatpush1.msra.mxu0 %v433
    %511 = vmatprep.subr.mxu0 %v436
    %512 = vmatpush1.msra.mxu0 %v435
    %513 = vmatprep.subr.mxu0 %v438
    %514 = vmatpush1.msra.mxu0 %v437
    %515 = vmatprep.subr.mxu0 %v440
    %516 = vmatpush1.msra.mxu0 %v439
    %517 = vmatprep.subr.mxu0 %v442
    %518 = vmatpush1.msra.mxu0 %v441
    %519 = vmatprep.subr.mxu0 %v444
    %520 = vmatpush1.msra.mxu0 %v443
    %521 = vmatprep.subr.mxu0 %v446
    %522 = vmatpush1.msra.mxu0 %v445
    %523 = vmatprep.subr.mxu0 %v448
    %524 = vmatpush1.msra.mxu0 %v447
    %525 = vmatprep.subr.mxu0 %v450
    %526 = vmatpush1.msra.mxu0 %v449
    %527 = vmatprep.subr.mxu0 %v452
    %528 = vmatpush1.msra.mxu0 %v451
    %529 = vmatprep.subr.mxu0 %v454
    %530 = vmatpush1.msra.mxu0 %v453
    %531 = vmatprep.subr.mxu0 %v456
    %532 = vmatpush1.msra.mxu0 %v455
    %533 = vmatprep.subr.mxu0 %v458
    %534 = vmatpush1.msra.mxu0 %v457
    %535 = vmatprep.subr.mxu0 %v460
    %536 = vmatpush1.msra.mxu0 %v459
    %537 = vmatprep.subr.mxu0 %v462
    %538 = vmatpush1.msra.mxu0 %v461
    %539 = vmatprep.subr.mxu0 %v464
    %540 = vmatpush1.msra.mxu0 %v463
    %541 = vmatprep.subr.mxu0 %v466
    %542 = vmatpush1.msra.mxu0 %v465
    %543 = vmatprep.subr.mxu0 %v468
    %544 = vmatpush1.msra.mxu0 %v467
    %545 = vmatprep.subr.mxu0 %v470
    %546 = vmatpush1.msra.mxu0 %v469
    %547 = vmatprep.subr.mxu0 %v472
    %548 = vmatpush1.msra.mxu0 %v471
    %549 = vmatprep.subr.mxu0 %v474
    %550 = vmatpush1.msra.mxu0 %v473
    %551 = vmatprep.subr.mxu0 %v476
    %552 = vmatpush1.msra.mxu0 %v475
    %553 = vmatprep.subr.mxu0 %v478
    %554 = vmatpush1.msra.mxu0 %v477
    %555 = vmatprep.subr.mxu0 %v480
    %556 = vmatpush1.msra.mxu0 %v479
    %557 = vmatprep.subr.mxu0 %v482
    %558 = vmatpush1.msra.mxu0 %v481
    %559 = vmatprep.mubr.f32.mxu0 %v418
    %560 = vmatmul.mubr.f32.gmra.mrb[0].mxu0 %v417
    %v561 = vpop.f32.mrb[0].mxu0
    %v562 = vadd.f32 %v488, %v561
    %v563 = vpop.f32.mrb[0].mxu0
    %v564 = vadd.f32 %v492, %v563
    %565 = vdwg.mxu0
    %v566 = vmul.f32 %v562, 0.5
    %v567 = vmul.f32 %v564, 0.5
    %v568 = vmul.f32 %v562, %v239
    %v569 = vmul.f32 %v564, %v239
    %v570 = verf.f32.pop %v568
    %v571 = verf.f32.pop %v569
    %v572 = vadd.f32 %v570, 1.0
    %v573 = vadd.f32 %v571, 1.0
    %v574 = vmul.f32 %v566, %v572
    %v575 = vmul.f32 %v567, %v573
    %v576 = vadd.f32 %v574, %v42
    %v577 = vadd.f32 %v575, %v43
    %578 = vst [vmem:[#allocation2] sm:$0xff] %v576
    %579 = vst [vmem:[#allocation2 + $0x8] sm:$0xff] %v577
    // Predicated region
    $region50: #{_lambda_.3} parent=1 // pred_check
      _
    $region51: #{_lambda_.3} parent=1 // pred_check_branch
      %581 = sbr.rel (0) target = $region53
    $region52: #{_lambda_.3} parent=1 // pred_region
      %s583 = ssub.s32 256, 256
      %584 = vsyncadd [#allocation3], %s583
      %s586 = sshll.u32 [#allocation2], 4
      %s587 = int_to_ptr.vmem [resolvable:$true] %s586
      %589 = dma.vmem_to_hbm [thread:$0]  %s587, 256, %s12, [#allocation3]
    $region53: #{_lambda_.3} parent=1 // pred_fallthru
      _
    // Predicated region
    $region54: #{_lambda_.3} parent=1 // pred_check
      _
    $region55: #{_lambda_.3} parent=1 // pred_check_branch
      %591 = sbr.rel (0) target = $region57
    $region56: #{_lambda_.3} parent=1 // pred_region
      %592 = dma.done [#allocation3], 256
    $region57: #{_lambda_.3} parent=1 // pred_fallthru
      _
    %593 = vsyncpa [#allocation3], 1

// kernel: _lambda_.2
$region0: #{_lambda_.2}
  #allocation0 [shape = 'u32[]', space=smem, size = 0x4, offset = 0x4, fixed_abs, tag = 'smem constant byte address 0x4 - core index']
  #allocation1 [shape = 'u32[144,128]{1,0:T(1,128)}', space=vmem, size = 0x12000, scoped, tag = 'internal scratch']
  %s0 = inlined_call_operand.vmem [shape: f32[8,128], index: 0, kind: input, shape index: {}]
  %s1 = inlined_call_operand.vmem [shape: f32[8,128], index: 1, kind: input, shape index: {}]
  %s2 = inlined_call_operand.hbm [shape: f32[128,256], index: 2, kind: input, shape index: {}]
  %s3 = inlined_call_operand.vmem [shape: f32[1,256], index: 3, kind: input, shape index: {}]
  %s4 = inlined_call_operand.hbm [shape: f32[1,128], index: 4, kind: input, shape index: {}]
  %s5 = inlined_call_operand.hbm [shape: f32[1,128], index: 5, kind: input, shape index: {}]
  %s6 = inlined_call_operand.hbm [shape: f32[128,256], index: 6, kind: input, shape index: {}]
  %s7 = inlined_call_operand.hbm [shape: f32[1,256], index: 7, kind: input, shape index: {}]
  %s8 = inlined_call_operand.hbm [shape: f32[128,256], index: 8, kind: input, shape index: {}]
  %s9 = inlined_call_operand.vmem [shape: f32[1,256], index: 9, kind: input, shape index: {}]
  %s10 = inlined_call_operand.vmem [shape: f32[1,256], index: 10, kind: input, shape index: {}]
  %s11 = inlined_call_operand.hbm [shape: f32[1,256], index: 11, kind: input, shape index: {}]
  %s12 = inlined_call_operand.hbm [shape: f32[256,256], index: 12, kind: input, shape index: {}]
  %s13 = inlined_call_operand.hbm [shape: f32[1,256], index: 13, kind: input, shape index: {}]
  %s14 = inlined_call_operand.vmem [shape: f32[8,256], index: 14, kind: output, shape index: {}]
  %s15 = sld [smem:[#allocation0]]
  $region102: #{_lambda_.2} parent=0
    _
  %s17 = ssub.s32 1, %s15
  %s18 = scalar_select 0, %s17, %s15
  $region1: #{_lambda_.2} parent=0
    #allocation2 [shape = 'u8[131072]{0}', space=vmem, size = 0x20000, scoped, tag = 'input window, operand 2, single buffered']
    #allocation3 [shape = 's32[1]{0}', space=sflag, size = 0x4, scoped, tag = 'scoped memory for _lambda_.2']
    #allocation4 [shape = 'u8[512]{0}', space=vmem, size = 0x400, scoped, tag = 'input window, operand 4, single buffered']
    #allocation5 [shape = 's32[1]{0}', space=sflag, size = 0x4, scoped, tag = 'scoped memory for _lambda_.2']
    #allocation6 [shape = 'u8[512]{0}', space=vmem, size = 0x400, scoped, tag = 'input window, operand 5, single buffered']
    #allocation7 [shape = 'u8[131072]{0}', space=vmem, size = 0x20000, scoped, tag = 'input window, operand 6, single buffered']
    #allocation8 [shape = 's32[1]{0}', space=sflag, size = 0x4, scoped, tag = 'scoped memory for _lambda_.2']
    #allocation9 [shape = 'u8[1024]{0}', space=vmem, size = 0x400, scoped, tag = 'input window, operand 7, single buffered']
    #allocation10 [shape = 'u8[131072]{0}', space=vmem, size = 0x20000, scoped, tag = 'input window, operand 8, single buffered']
    #allocation11 [shape = 's32[1]{0}', space=sflag, size = 0x4, scoped, tag = 'scoped memory for _lambda_.2']
    #allocation12 [shape = 'u8[1024]{0}', space=vmem, size = 0x400, scoped, tag = 'input window, operand 11, single buffered']
    #allocation13 [shape = 'u8[262144]{0}', space=vmem, size = 0x40000, scoped, tag = 'input window, operand 12, single buffered']
    #allocation14 [shape = 's32[1]{0}', space=sflag, size = 0x4, scoped, tag = 'scoped memory for _lambda_.2']
    #allocation15 [shape = 'u8[1024]{0}', space=vmem, size = 0x400, scoped, tag = 'input window, operand 13, single buffered']
    %19 = vsyncpa [#allocation3], 0
    %20 = vsyncpa [#allocation5], 0
    %21 = vsyncpa [#allocation8], 0
    %22 = vsyncpa [#allocation11], 0
    %23 = vsyncpa [#allocation14], 0
    // Predicated region
    $region2: #{_lambda_.2} parent=1 // pred_check
      _
    $region3: #{_lambda_.2} parent=1 // pred_check_branch
      %25 = sbr.rel (0) target = $region5
    $region4: #{_lambda_.2} parent=1 // pred_region
      _
    $region5: #{_lambda_.2} parent=1 // pred_fallthru
      _
    // Predicated region
    $region6: #{_lambda_.2} parent=1 // pred_check
      _
    $region7: #{_lambda_.2} parent=1 // pred_check_branch
      %27 = sbr.rel (0) target = $region9
    $region8: #{_lambda_.2} parent=1 // pred_region
      _
    $region9: #{_lambda_.2} parent=1 // pred_fallthru
      _
    // Predicated region
    $region10: #{_lambda_.2} parent=1 // pred_check
      _
    $region11: #{_lambda_.2} parent=1 // pred_check_branch
      %29 = sbr.rel (0) target = $region13
    $region12: #{_lambda_.2} parent=1 // pred_region
      %s31 = ssub.s32 4096, 4096
      %32 = vsyncadd [#allocation3], %s31
      %s33 = sshll.u32 [#allocation2], 4
      %s34 = int_to_ptr.vmem [resolvable:$true] %s33
      %39 = dma.hbm_to_vmem [thread:$0]  %s2, 4096, %s34, [#allocation3], 256, 256, 16
    $region13: #{_lambda_.2} parent=1 // pred_fallthru
      _
    // Predicated region
    $region14: #{_lambda_.2} parent=1 // pred_check
      _
    $region15: #{_lambda_.2} parent=1 // pred_check_branch
      %41 = sbr.rel (0) target = $region17
    $region16: #{_lambda_.2} parent=1 // pred_region
      _
    $region17: #{_lambda_.2} parent=1 // pred_fallthru
      _
    // Predicated region
    $region18: #{_lambda_.2} parent=1 // pred_check
      _
    $region19: #{_lambda_.2} parent=1 // pred_check_branch
      %43 = sbr.rel (0) target = $region21
    $region20: #{_lambda_.2} parent=1 // pred_region
      %s45 = ssub.s32 16, 16
      %46 = vsyncadd [#allocation5], %s45
      %s48 = sshll.u32 [#allocation4], 4
      %s49 = int_to_ptr.vmem [resolvable:$true] %s48
      %51 = dma.hbm_to_vmem [thread:$0]  %s4, 16, %s49, [#allocation5]
    $region21: #{_lambda_.2} parent=1 // pred_fallthru
      _
    // Predicated region
    $region22: #{_lambda_.2} parent=1 // pred_check
      _
    $region23: #{_lambda_.2} parent=1 // pred_check_branch
      %53 = sbr.rel (0) target = $region25
    $region24: #{_lambda_.2} parent=1 // pred_region
      %s55 = ssub.s32 16, 16
      %56 = vsyncadd [#allocation5], %s55
      %s58 = sshll.u32 [#allocation6], 4
      %s59 = int_to_ptr.vmem [resolvable:$true] %s58
      %61 = dma.hbm_to_vmem [thread:$0]  %s5, 16, %s59, [#allocation5]
    $region25: #{_lambda_.2} parent=1 // pred_fallthru
      _
    // Predicated region
    $region26: #{_lambda_.2} parent=1 // pred_check
      _
    $region27: #{_lambda_.2} parent=1 // pred_check_branch
      %63 = sbr.rel (0) target = $region29
    $region28: #{_lambda_.2} parent=1 // pred_region
      %s65 = ssub.s32 4096, 4096
      %66 = vsyncadd [#allocation8], %s65
      %s67 = sshll.u32 [#allocation7], 4
      %s68 = int_to_ptr.vmem [resolvable:$true] %s67
      %73 = dma.hbm_to_vmem [thread:$0]  %s6, 4096, %s68, [#allocation8], 256, 256, 16
    $region29: #{_lambda_.2} parent=1 // pred_fallthru
      _
    // Predicated region
    $region30: #{_lambda_.2} parent=1 // pred_check
      _
    $region31: #{_lambda_.2} parent=1 // pred_check_branch
      %75 = sbr.rel (0) target = $region33
    $region32: #{_lambda_.2} parent=1 // pred_region
      %s77 = ssub.s32 32, 32
      %78 = vsyncadd [#allocation8], %s77
      %s80 = sshll.u32 [#allocation9], 4
      %s81 = int_to_ptr.vmem [resolvable:$true] %s80
      %83 = dma.hbm_to_vmem [thread:$0]  %s7, 32, %s81, [#allocation8]
    $region33: #{_lambda_.2} parent=1 // pred_fallthru
      _
    // Predicated region
    $region34: #{_lambda_.2} parent=1 // pred_check
      _
    $region35: #{_lambda_.2} parent=1 // pred_check_branch
      %85 = sbr.rel (0) target = $region37
    $region36: #{_lambda_.2} parent=1 // pred_region
      %s87 = ssub.s32 4096, 4096
      %88 = vsyncadd [#allocation11], %s87
      %s89 = sshll.u32 [#allocation10], 4
      %s90 = int_to_ptr.vmem [resolvable:$true] %s89
      %95 = dma.hbm_to_vmem [thread:$0]  %s8, 4096, %s90, [#allocation11], 256, 256, 16
    $region37: #{_lambda_.2} parent=1 // pred_fallthru
      _
    // Predicated region
    $region38: #{_lambda_.2} parent=1 // pred_check
      _
    $region39: #{_lambda_.2} parent=1 // pred_check_branch
      %97 = sbr.rel (0) target = $region41
    $region40: #{_lambda_.2} parent=1 // pred_region
      _
    $region41: #{_lambda_.2} parent=1 // pred_fallthru
      _
    // Predicated region
    $region42: #{_lambda_.2} parent=1 // pred_check
      _
    $region43: #{_lambda_.2} parent=1 // pred_check_branch
      %99 = sbr.rel (0) target = $region45
    $region44: #{_lambda_.2} parent=1 // pred_region
      _
    $region45: #{_lambda_.2} parent=1 // pred_fallthru
      _
    // Predicated region
    $region46: #{_lambda_.2} parent=1 // pred_check
      _
    $region47: #{_lambda_.2} parent=1 // pred_check_branch
      %101 = sbr.rel (0) target = $region49
    $region48: #{_lambda_.2} parent=1 // pred_region
      %s103 = ssub.s32 32, 32
      %104 = vsyncadd [#allocation11], %s103
      %s106 = sshll.u32 [#allocation12], 4
      %s107 = int_to_ptr.vmem [resolvable:$true] %s106
      %109 = dma.hbm_to_vmem [thread:$0]  %s11, 32, %s107, [#allocation11]
    $region49: #{_lambda_.2} parent=1 // pred_fallthru
      _
    // Predicated region
    $region50: #{_lambda_.2} parent=1 // pred_check
      _
    $region51: #{_lambda_.2} parent=1 // pred_check_branch
      %111 = sbr.rel (0) target = $region53
    $region52: #{_lambda_.2} parent=1 // pred_region
      %s113 = ssub.s32 8192, 8192
      %114 = vsyncadd [#allocation14], %s113
      %s115 = sshll.u32 [#allocation13], 4
      %s116 = int_to_ptr.vmem [resolvable:$true] %s115
      %121 = dma.hbm_to_vmem [thread:$0]  %s12, 8192, %s116, [#allocation14], 256, 256, 16
    $region53: #{_lambda_.2} parent=1 // pred_fallthru
      _
    // Predicated region
    $region54: #{_lambda_.2} parent=1 // pred_check
      _
    $region55: #{_lambda_.2} parent=1 // pred_check_branch
      %123 = sbr.rel (0) target = $region57
    $region56: #{_lambda_.2} parent=1 // pred_region
      %s125 = ssub.s32 32, 32
      %126 = vsyncadd [#allocation14], %s125
      %s128 = sshll.u32 [#allocation15], 4
      %s129 = int_to_ptr.vmem [resolvable:$true] %s128
      %131 = dma.hbm_to_vmem [thread:$0]  %s13, 32, %s129, [#allocation14]
    $region57: #{_lambda_.2} parent=1 // pred_fallthru
      _
    // Predicated region
    $region58: #{_lambda_.2} parent=1 // pred_check
      _
    $region59: #{_lambda_.2} parent=1 // pred_check_branch
      %133 = sbr.rel (0) target = $region61
    $region60: #{_lambda_.2} parent=1 // pred_region
      %134 = dma.done [#allocation3], 4096
    $region61: #{_lambda_.2} parent=1 // pred_fallthru
      _
    // Predicated region
    $region62: #{_lambda_.2} parent=1 // pred_check
      _
    $region63: #{_lambda_.2} parent=1 // pred_check_branch
      %136 = sbr.rel (0) target = $region65
    $region64: #{_lambda_.2} parent=1 // pred_region
      %137 = dma.done [#allocation5], 16
    $region65: #{_lambda_.2} parent=1 // pred_fallthru
      _
    // Predicated region
    $region66: #{_lambda_.2} parent=1 // pred_check
      _
    $region67: #{_lambda_.2} parent=1 // pred_check_branch
      %139 = sbr.rel (0) target = $region69
    $region68: #{_lambda_.2} parent=1 // pred_region
      %140 = dma.done [#allocation5], 16
    $region69: #{_lambda_.2} parent=1 // pred_fallthru
      _
    // Predicated region
    $region70: #{_lambda_.2} parent=1 // pred_check
      _
    $region71: #{_lambda_.2} parent=1 // pred_check_branch
      %142 = sbr.rel (0) target = $region73
    $region72: #{_lambda_.2} parent=1 // pred_region
      %143 = dma.done [#allocation8], 4096
    $region73: #{_lambda_.2} parent=1 // pred_fallthru
      _
    // Predicated region
    $region74: #{_lambda_.2} parent=1 // pred_check
      _
    $region75: #{_lambda_.2} parent=1 // pred_check_branch
      %145 = sbr.rel (0) target = $region77
    $region76: #{_lambda_.2} parent=1 // pred_region
      %146 = dma.done [#allocation8], 32
    $region77: #{_lambda_.2} parent=1 // pred_fallthru
      _
    // Predicated region
    $region78: #{_lambda_.2} parent=1 // pred_check
      _
    $region79: #{_lambda_.2} parent=1 // pred_check_branch
      %148 = sbr.rel (0) target = $region81
    $region80: #{_lambda_.2} parent=1 // pred_region
      %149 = dma.done [#allocation11], 4096
    $region81: #{_lambda_.2} parent=1 // pred_fallthru
      _
    // Predicated region
    $region82: #{_lambda_.2} parent=1 // pred_check
      _
    $region83: #{_lambda_.2} parent=1 // pred_check_branch
      %151 = sbr.rel (0) target = $region85
    $region84: #{_lambda_.2} parent=1 // pred_region
      %152 = dma.done [#allocation11], 32
    $region85: #{_lambda_.2} parent=1 // pred_fallthru
      _
    // Predicated region
    $region86: #{_lambda_.2} parent=1 // pred_check
      _
    $region87: #{_lambda_.2} parent=1 // pred_check_branch
      %154 = sbr.rel (0) target = $region89
    $region88: #{_lambda_.2} parent=1 // pred_region
      %155 = dma.done [#allocation14], 8192
    $region89: #{_lambda_.2} parent=1 // pred_fallthru
      _
    // Predicated region
    $region90: #{_lambda_.2} parent=1 // pred_check
      _
    $region91: #{_lambda_.2} parent=1 // pred_check_branch
      %157 = sbr.rel (0) target = $region93
    $region92: #{_lambda_.2} parent=1 // pred_region
      %158 = dma.done [#allocation14], 32
    $region93: #{_lambda_.2} parent=1 // pred_fallthru
      _
    %v159 = vld [vmem:[%s0] sm:$0xff]
    %v160 = vld [vmem:[%s1] sm:$0xff]
    %v161 = vld [vmem:[#allocation2] sm:$0xff]
    %v162 = vld [vmem:[#allocation2 + $0x8] sm:$0xff]
    %v163 = vld [vmem:[#allocation2 + $0x10] sm:$0xff]
    %v164 = vld [vmem:[#allocation2 + $0x18] sm:$0xff]
    %v165 = vld [vmem:[#allocation2 + $0x20] sm:$0xff]
    %v166 = vld [vmem:[#allocation2 + $0x28] sm:$0xff]
    %v167 = vld [vmem:[#allocation2 + $0x30] sm:$0xff]
    %v168 = vld [vmem:[#allocation2 + $0x38] sm:$0xff]
    %v169 = vld [vmem:[#allocation2 + $0x40] sm:$0xff]
    %v170 = vld [vmem:[#allocation2 + $0x48] sm:$0xff]
    %v171 = vld [vmem:[#allocation2 + $0x50] sm:$0xff]
    %v172 = vld [vmem:[#allocation2 + $0x58] sm:$0xff]
    %v173 = vld [vmem:[#allocation2 + $0x60] sm:$0xff]
    %v174 = vld [vmem:[#allocation2 + $0x68] sm:$0xff]
    %v175 = vld [vmem:[#allocation2 + $0x70] sm:$0xff]
    %v176 = vld [vmem:[#allocation2 + $0x78] sm:$0xff]
    %v177 = vld [vmem:[#allocation2 + $0x80] sm:$0xff]
    %v178 = vld [vmem:[#allocation2 + $0x88] sm:$0xff]
    %v179 = vld [vmem:[#allocation2 + $0x90] sm:$0xff]
    %v180 = vld [vmem:[#allocation2 + $0x98] sm:$0xff]
    %v181 = vld [vmem:[#allocation2 + $0xa0] sm:$0xff]
    %v182 = vld [vmem:[#allocation2 + $0xa8] sm:$0xff]
    %v183 = vld [vmem:[#allocation2 + $0xb0] sm:$0xff]
    %v184 = vld [vmem:[#allocation2 + $0xb8] sm:$0xff]
    %v185 = vld [vmem:[#allocation2 + $0xc0] sm:$0xff]
    %v186 = vld [vmem:[#allocation2 + $0xc8] sm:$0xff]
    %v187 = vld [vmem:[#allocation2 + $0xd0] sm:$0xff]
    %v188 = vld [vmem:[#allocation2 + $0xd8] sm:$0xff]
    %v189 = vld [vmem:[#allocation2 + $0xe0] sm:$0xff]
    %v190 = vld [vmem:[#allocation2 + $0xe8] sm:$0xff]
    %v191 = vld [vmem:[#allocation2 + $0xf0] sm:$0xff]
    %v192 = vld [vmem:[#allocation2 + $0xf8] sm:$0xff]
    %v193 = vld [vmem:[%s3] sm:$0x3]
    %v195 = vlaneseq
    %v196 = vshrl.u32 %v195, 7
    %v197 = vsub.s32 0, %v196
    %v198 = vrot.slane %v193, %v197
    %v199 = vlaneseq
    %v200 = vshrl.u32 %v199, 7
    %v201 = vsub.s32 1, %v200
    %v202 = vrot.slane %v193, %v201
    %205 = vmatprep.subr.mxu0 %v162
    %206 = vmatpush1.msra.mxu0 %v161
    %207 = vmatprep.subr.mxu0 %v164
    %208 = vmatpush1.msra.mxu0 %v163
    %209 = vmatprep.subr.mxu0 %v166
    %210 = vmatpush1.msra.mxu0 %v165
    %211 = vmatprep.subr.mxu0 %v168
    %212 = vmatpush1.msra.mxu0 %v167
    %213 = vmatprep.subr.mxu0 %v170
    %214 = vmatpush1.msra.mxu0 %v169
    %215 = vmatprep.subr.mxu0 %v172
    %216 = vmatpush1.msra.mxu0 %v171
    %217 = vmatprep.subr.mxu0 %v174
    %218 = vmatpush1.msra.mxu0 %v173
    %219 = vmatprep.subr.mxu0 %v176
    %220 = vmatpush1.msra.mxu0 %v175
    %221 = vmatprep.subr.mxu0 %v178
    %222 = vmatpush1.msra.mxu0 %v177
    %223 = vmatprep.subr.mxu0 %v180
    %224 = vmatpush1.msra.mxu0 %v179
    %225 = vmatprep.subr.mxu0 %v182
    %226 = vmatpush1.msra.mxu0 %v181
    %227 = vmatprep.subr.mxu0 %v184
    %228 = vmatpush1.msra.mxu0 %v183
    %229 = vmatprep.subr.mxu0 %v186
    %230 = vmatpush1.msra.mxu0 %v185
    %231 = vmatprep.subr.mxu0 %v188
    %232 = vmatpush1.msra.mxu0 %v187
    %233 = vmatprep.subr.mxu0 %v190
    %234 = vmatpush1.msra.mxu0 %v189
    %235 = vmatprep.subr.mxu0 %v192
    %236 = vmatpush1.msra.mxu0 %v191
    %237 = vmatprep.subr.mxu0 0.0
    %238 = vmatpush1.msra.mxu0 0.0
    %239 = vmatprep.subr.mxu0 0.0
    %240 = vmatpush1.msra.mxu0 0.0
    %241 = vmatprep.subr.mxu0 0.0
    %242 = vmatpush1.msra.mxu0 0.0
    %243 = vmatprep.subr.mxu0 0.0
    %244 = vmatpush1.msra.mxu0 0.0
    %245 = vmatprep.subr.mxu0 0.0
    %246 = vmatpush1.msra.mxu0 0.0
    %247 = vmatprep.subr.mxu0 0.0
    %248 = vmatpush1.msra.mxu0 0.0
    %249 = vmatprep.subr.mxu0 0.0
    %250 = vmatpush1.msra.mxu0 0.0
    %251 = vmatprep.subr.mxu0 0.0
    %252 = vmatpush1.msra.mxu0 0.0
    %253 = vmatprep.subr.mxu0 0.0
    %254 = vmatpush1.msra.mxu0 0.0
    %255 = vmatprep.subr.mxu0 0.0
    %256 = vmatpush1.msra.mxu0 0.0
    %257 = vmatprep.subr.mxu0 0.0
    %258 = vmatpush1.msra.mxu0 0.0
    %259 = vmatprep.subr.mxu0 0.0
    %260 = vmatpush1.msra.mxu0 0.0
    %261 = vmatprep.subr.mxu0 0.0
    %262 = vmatpush1.msra.mxu0 0.0
    %263 = vmatprep.subr.mxu0 0.0
    %264 = vmatpush1.msra.mxu0 0.0
    %265 = vmatprep.subr.mxu0 0.0
    %266 = vmatpush1.msra.mxu0 0.0
    %267 = vmatprep.subr.mxu0 0.0
    %268 = vmatpush1.msra.mxu0 0.0
    %269 = vmatprep.mubr.f32.mxu0 0.0
    %270 = vmatmul.mubr.f32.gmra.mrb[0].mxu0 %v159
    %v271 = vpop.f32.mrb[0].mxu0
    %v272 = vadd.f32 %v198, %v271
    %v273 = vpop.f32.mrb[0].mxu0
    %v274 = vadd.f32 %v202, %v273
    %275 = vdwg.mxu0
    %v276 = vld [vmem:[#allocation4] sm:$0x1]
    %v277 = vld [vmem:[#allocation6] sm:$0x1]
    %278 = vadd.xlane.f32.xlu0 %v159
    %v279 = vpop.xlane.xlu0 %278
    %v280 = vrcp.pop 128.0
    %v281 = vmul.f32 %v279, %v280
    %v282 = vsub.f32 %v159, %v281
    %v283 = vmul.f32 %v282, %v282
    %284 = vadd.xlane.f32.xlu0 %v283
    %v285 = vpop.xlane.xlu0 %284
    %v286 = vmul.f32 %v285, %v280
    %v287 = vadd.f32 %v286, 1e-05
    %v288 = vrsqrt.pop %v287
    %v289 = vmul.f32 %v282, %v288
    %v291 = vlaneseq
    %v292 = vshrl.u32 %v291, 7
    %v293 = vsub.s32 0, %v292
    %v294 = vrot.slane %v276, %v293
    %v296 = vmul.f32 %v289, %v294
    %v298 = vlaneseq
    %v299 = vshrl.u32 %v298, 7
    %v300 = vsub.s32 0, %v299
    %v301 = vrot.slane %v277, %v300
    %v303 = vadd.f32 %v296, %v301
    %v304 = vld [vmem:[#allocation7] sm:$0xff]
    %v305 = vld [vmem:[#allocation7 + $0x8] sm:$0xff]
    %v306 = vld [vmem:[#allocation7 + $0x10] sm:$0xff]
    %v307 = vld [vmem:[#allocation7 + $0x18] sm:$0xff]
    %v308 = vld [vmem:[#allocation7 + $0x20] sm:$0xff]
    %v309 = vld [vmem:[#allocation7 + $0x28] sm:$0xff]
    %v310 = vld [vmem:[#allocation7 + $0x30] sm:$0xff]
    %v311 = vld [vmem:[#allocation7 + $0x38] sm:$0xff]
    %v312 = vld [vmem:[#allocation7 + $0x40] sm:$0xff]
    %v313 = vld [vmem:[#allocation7 + $0x48] sm:$0xff]
    %v314 = vld [vmem:[#allocation7 + $0x50] sm:$0xff]
    %v315 = vld [vmem:[#allocation7 + $0x58] sm:$0xff]
    %v316 = vld [vmem:[#allocation7 + $0x60] sm:$0xff]
    %v317 = vld [vmem:[#allocation7 + $0x68] sm:$0xff]
    %v318 = vld [vmem:[#allocation7 + $0x70] sm:$0xff]
    %v319 = vld [vmem:[#allocation7 + $0x78] sm:$0xff]
    %v320 = vld [vmem:[#allocation7 + $0x80] sm:$0xff]
    %v321 = vld [vmem:[#allocation7 + $0x88] sm:$0xff]
    %v322 = vld [vmem:[#allocation7 + $0x90] sm:$0xff]
    %v323 = vld [vmem:[#allocation7 + $0x98] sm:$0xff]
    %v324 = vld [vmem:[#allocation7 + $0xa0] sm:$0xff]
    %v325 = vld [vmem:[#allocation7 + $0xa8] sm:$0xff]
    %v326 = vld [vmem:[#allocation7 + $0xb0] sm:$0xff]
    %v327 = vld [vmem:[#allocation7 + $0xb8] sm:$0xff]
    %v328 = vld [vmem:[#allocation7 + $0xc0] sm:$0xff]
    %v329 = vld [vmem:[#allocation7 + $0xc8] sm:$0xff]
    %v330 = vld [vmem:[#allocation7 + $0xd0] sm:$0xff]
    %v331 = vld [vmem:[#allocation7 + $0xd8] sm:$0xff]
    %v332 = vld [vmem:[#allocation7 + $0xe0] sm:$0xff]
    %v333 = vld [vmem:[#allocation7 + $0xe8] sm:$0xff]
    %v334 = vld [vmem:[#allocation7 + $0xf0] sm:$0xff]
    %v335 = vld [vmem:[#allocation7 + $0xf8] sm:$0xff]
    %v336 = vld [vmem:[#allocation9] sm:$0x3]
    %v338 = vlaneseq
    %v339 = vshrl.u32 %v338, 7
    %v340 = vsub.s32 0, %v339
    %v341 = vrot.slane %v336, %v340
    %v342 = vlaneseq
    %v343 = vshrl.u32 %v342, 7
    %v344 = vsub.s32 1, %v343
    %v345 = vrot.slane %v336, %v344
    %348 = vmatprep.subr.mxu0 %v305
    %349 = vmatpush1.msra.mxu0 %v304
    %350 = vmatprep.subr.mxu0 %v307
    %351 = vmatpush1.msra.mxu0 %v306
    %352 = vmatprep.subr.mxu0 %v309
    %353 = vmatpush1.msra.mxu0 %v308
    %354 = vmatprep.subr.mxu0 %v311
    %355 = vmatpush1.msra.mxu0 %v310
    %356 = vmatprep.subr.mxu0 %v313
    %357 = vmatpush1.msra.mxu0 %v312
    %358 = vmatprep.subr.mxu0 %v315
    %359 = vmatpush1.msra.mxu0 %v314
    %360 = vmatprep.subr.mxu0 %v317
    %361 = vmatpush1.msra.mxu0 %v316
    %362 = vmatprep.subr.mxu0 %v319
    %363 = vmatpush1.msra.mxu0 %v318
    %364 = vmatprep.subr.mxu0 %v321
    %365 = vmatpush1.msra.mxu0 %v320
    %366 = vmatprep.subr.mxu0 %v323
    %367 = vmatpush1.msra.mxu0 %v322
    %368 = vmatprep.subr.mxu0 %v325
    %369 = vmatpush1.msra.mxu0 %v324
    %370 = vmatprep.subr.mxu0 %v327
    %371 = vmatpush1.msra.mxu0 %v326
    %372 = vmatprep.subr.mxu0 %v329
    %373 = vmatpush1.msra.mxu0 %v328
    %374 = vmatprep.subr.mxu0 %v331
    %375 = vmatpush1.msra.mxu0 %v330
    %376 = vmatprep.subr.mxu0 %v333
    %377 = vmatpush1.msra.mxu0 %v332
    %378 = vmatprep.subr.mxu0 %v335
    %379 = vmatpush1.msra.mxu0 %v334
    %380 = vmatprep.subr.mxu0 0.0
    %381 = vmatpush1.msra.mxu0 0.0
    %382 = vmatprep.subr.mxu0 0.0
    %383 = vmatpush1.msra.mxu0 0.0
    %384 = vmatprep.subr.mxu0 0.0
    %385 = vmatpush1.msra.mxu0 0.0
    %386 = vmatprep.subr.mxu0 0.0
    %387 = vmatpush1.msra.mxu0 0.0
    %388 = vmatprep.subr.mxu0 0.0
    %389 = vmatpush1.msra.mxu0 0.0
    %390 = vmatprep.subr.mxu0 0.0
    %391 = vmatpush1.msra.mxu0 0.0
    %392 = vmatprep.subr.mxu0 0.0
    %393 = vmatpush1.msra.mxu0 0.0
    %394 = vmatprep.subr.mxu0 0.0
    %395 = vmatpush1.msra.mxu0 0.0
    %396 = vmatprep.subr.mxu0 0.0
    %397 = vmatpush1.msra.mxu0 0.0
    %398 = vmatprep.subr.mxu0 0.0
    %399 = vmatpush1.msra.mxu0 0.0
    %400 = vmatprep.subr.mxu0 0.0
    %401 = vmatpush1.msra.mxu0 0.0
    %402 = vmatprep.subr.mxu0 0.0
    %403 = vmatpush1.msra.mxu0 0.0
    %404 = vmatprep.subr.mxu0 0.0
    %405 = vmatpush1.msra.mxu0 0.0
    %406 = vmatprep.subr.mxu0 0.0
    %407 = vmatpush1.msra.mxu0 0.0
    %408 = vmatprep.subr.mxu0 0.0
    %409 = vmatpush1.msra.mxu0 0.0
    %410 = vmatprep.subr.mxu0 0.0
    %411 = vmatpush1.msra.mxu0 0.0
    %412 = vmatprep.mubr.f32.mxu0 0.0
    %413 = vmatmul.mubr.f32.gmra.mrb[0].mxu0 %v303
    %v414 = vpop.f32.mrb[0].mxu0
    %v415 = vadd.f32 %v341, %v414
    %v416 = vpop.f32.mrb[0].mxu0
    %v417 = vadd.f32 %v345, %v416
    %418 = vdwg.mxu0
    %v419 = vmul.f32 %v415, 0.5
    %v420 = vmul.f32 %v417, 0.5
    %v421 = vrcp.pop 1.4142135
    %v422 = vmul.f32 %v415, %v421
    %v423 = vmul.f32 %v417, %v421
    %v424 = verf.f32.pop %v422
    %v425 = verf.f32.pop %v423
    %v426 = vadd.f32 %v424, 1.0
    %v427 = vadd.f32 %v425, 1.0
    %v428 = vmul.f32 %v419, %v426
    %v429 = vmul.f32 %v420, %v427
    %v430 = vld [vmem:[#allocation10] sm:$0xff]
    %v431 = vld [vmem:[#allocation10 + $0x8] sm:$0xff]
    %v432 = vld [vmem:[#allocation10 + $0x10] sm:$0xff]
    %v433 = vld [vmem:[#allocation10 + $0x18] sm:$0xff]
    %v434 = vld [vmem:[#allocation10 + $0x20] sm:$0xff]
    %v435 = vld [vmem:[#allocation10 + $0x28] sm:$0xff]
    %v436 = vld [vmem:[#allocation10 + $0x30] sm:$0xff]
    %v437 = vld [vmem:[#allocation10 + $0x38] sm:$0xff]
    %v438 = vld [vmem:[#allocation10 + $0x40] sm:$0xff]
    %v439 = vld [vmem:[#allocation10 + $0x48] sm:$0xff]
    %v440 = vld [vmem:[#allocation10 + $0x50] sm:$0xff]
    %v441 = vld [vmem:[#allocation10 + $0x58] sm:$0xff]
    %v442 = vld [vmem:[#allocation10 + $0x60] sm:$0xff]
    %v443 = vld [vmem:[#allocation10 + $0x68] sm:$0xff]
    %v444 = vld [vmem:[#allocation10 + $0x70] sm:$0xff]
    %v445 = vld [vmem:[#allocation10 + $0x78] sm:$0xff]
    %v446 = vld [vmem:[#allocation10 + $0x80] sm:$0xff]
    %v447 = vld [vmem:[#allocation10 + $0x88] sm:$0xff]
    %v448 = vld [vmem:[#allocation10 + $0x90] sm:$0xff]
    %v449 = vld [vmem:[#allocation10 + $0x98] sm:$0xff]
    %v450 = vld [vmem:[#allocation10 + $0xa0] sm:$0xff]
    %v451 = vld [vmem:[#allocation10 + $0xa8] sm:$0xff]
    %v452 = vld [vmem:[#allocation10 + $0xb0] sm:$0xff]
    %v453 = vld [vmem:[#allocation10 + $0xb8] sm:$0xff]
    %v454 = vld [vmem:[#allocation10 + $0xc0] sm:$0xff]
    %v455 = vld [vmem:[#allocation10 + $0xc8] sm:$0xff]
    %v456 = vld [vmem:[#allocation10 + $0xd0] sm:$0xff]
    %v457 = vld [vmem:[#allocation10 + $0xd8] sm:$0xff]
    %v458 = vld [vmem:[#allocation10 + $0xe0] sm:$0xff]
    %v459 = vld [vmem:[#allocation10 + $0xe8] sm:$0xff]
    %v460 = vld [vmem:[#allocation10 + $0xf0] sm:$0xff]
    %v461 = vld [vmem:[#allocation10 + $0xf8] sm:$0xff]
    %v462 = vld [vmem:[%s9] sm:$0x3]
    %v464 = vlaneseq
    %v465 = vshrl.u32 %v464, 7
    %v466 = vsub.s32 0, %v465
    %v467 = vrot.slane %v462, %v466
    %v468 = vlaneseq
    %v469 = vshrl.u32 %v468, 7
    %v470 = vsub.s32 1, %v469
    %v471 = vrot.slane %v462, %v470
    %474 = vmatprep.subr.mxu0 %v431
    %475 = vmatpush1.msra.mxu0 %v430
    %476 = vmatprep.subr.mxu0 %v433
    %477 = vmatpush1.msra.mxu0 %v432
    %478 = vmatprep.subr.mxu0 %v435
    %479 = vmatpush1.msra.mxu0 %v434
    %480 = vmatprep.subr.mxu0 %v437
    %481 = vmatpush1.msra.mxu0 %v436
    %482 = vmatprep.subr.mxu0 %v439
    %483 = vmatpush1.msra.mxu0 %v438
    %484 = vmatprep.subr.mxu0 %v441
    %485 = vmatpush1.msra.mxu0 %v440
    %486 = vmatprep.subr.mxu0 %v443
    %487 = vmatpush1.msra.mxu0 %v442
    %488 = vmatprep.subr.mxu0 %v445
    %489 = vmatpush1.msra.mxu0 %v444
    %490 = vmatprep.subr.mxu0 %v447
    %491 = vmatpush1.msra.mxu0 %v446
    %492 = vmatprep.subr.mxu0 %v449
    %493 = vmatpush1.msra.mxu0 %v448
    %494 = vmatprep.subr.mxu0 %v451
    %495 = vmatpush1.msra.mxu0 %v450
    %496 = vmatprep.subr.mxu0 %v453
    %497 = vmatpush1.msra.mxu0 %v452
    %498 = vmatprep.subr.mxu0 %v455
    %499 = vmatpush1.msra.mxu0 %v454
    %500 = vmatprep.subr.mxu0 %v457
    %501 = vmatpush1.msra.mxu0 %v456
    %502 = vmatprep.subr.mxu0 %v459
    %503 = vmatpush1.msra.mxu0 %v458
    %504 = vmatprep.subr.mxu0 %v461
    %505 = vmatpush1.msra.mxu0 %v460
    %506 = vmatprep.subr.mxu0 0.0
    %507 = vmatpush1.msra.mxu0 0.0
    %508 = vmatprep.subr.mxu0 0.0
    %509 = vmatpush1.msra.mxu0 0.0
    %510 = vmatprep.subr.mxu0 0.0
    %511 = vmatpush1.msra.mxu0 0.0
    %512 = vmatprep.subr.mxu0 0.0
    %513 = vmatpush1.msra.mxu0 0.0
    %514 = vmatprep.subr.mxu0 0.0
    %515 = vmatpush1.msra.mxu0 0.0
    %516 = vmatprep.subr.mxu0 0.0
    %517 = vmatpush1.msra.mxu0 0.0
    %518 = vmatprep.subr.mxu0 0.0
    %519 = vmatpush1.msra.mxu0 0.0
    %520 = vmatprep.subr.mxu0 0.0
    %521 = vmatpush1.msra.mxu0 0.0
    %522 = vmatprep.subr.mxu0 0.0
    %523 = vmatpush1.msra.mxu0 0.0
    %524 = vmatprep.subr.mxu0 0.0
    %525 = vmatpush1.msra.mxu0 0.0
    %526 = vmatprep.subr.mxu0 0.0
    %527 = vmatpush1.msra.mxu0 0.0
    %528 = vmatprep.subr.mxu0 0.0
    %529 = vmatpush1.msra.mxu0 0.0
    %530 = vmatprep.subr.mxu0 0.0
    %531 = vmatpush1.msra.mxu0 0.0
    %532 = vmatprep.subr.mxu0 0.0
    %533 = vmatpush1.msra.mxu0 0.0
    %534 = vmatprep.subr.mxu0 0.0
    %535 = vmatpush1.msra.mxu0 0.0
    %536 = vmatprep.subr.mxu0 0.0
    %537 = vmatpush1.msra.mxu0 0.0
    %538 = vmatprep.mubr.f32.mxu0 0.0
    %539 = vmatmul.mubr.f32.gmra.mrb[0].mxu0 %v160
    %v540 = vpop.f32.mrb[0].mxu0
    %v541 = vadd.f32 %v467, %v540
    %v542 = vpop.f32.mrb[0].mxu0
    %v543 = vadd.f32 %v471, %v542
    %544 = vdwg.mxu0
    %v545 = vmul.f32 %v541, 0.5
    %v546 = vmul.f32 %v543, 0.5
    %v547 = vmul.f32 %v541, %v421
    %v548 = vmul.f32 %v543, %v421
    %v549 = verf.f32.pop %v547
    %v550 = verf.f32.pop %v548
    %v551 = vadd.f32 %v549, 1.0
    %v552 = vadd.f32 %v550, 1.0
    %v553 = vmul.f32 %v545, %v551
    %v554 = vmul.f32 %v546, %v552
    %v555 = vadd.f32 %v428, %v553
    %v556 = vadd.f32 %v429, %v554
    %v557 = vld [vmem:[%s10] sm:$0x3]
    %v558 = vld [vmem:[#allocation12] sm:$0x3]
    %v559 = vadd.f32 %v555, %v556
    %560 = vadd.xlane.f32.xlu0 %v559
    %v561 = vpop.xlane.xlu0 %560
    %v562 = vrcp.pop 256.0
    %v563 = vmul.f32 %v561, %v562
    %v564 = vsub.f32 %v555, %v563
    %v565 = vsub.f32 %v556, %v563
    %v566 = vmul.f32 %v564, %v564
    %v567 = vmul.f32 %v565, %v565
    %v568 = vadd.f32 %v566, %v567
    %569 = vadd.xlane.f32.xlu0 %v568
    %v570 = vpop.xlane.xlu0 %569
    %v571 = vmul.f32 %v570, %v562
    %v572 = vadd.f32 %v571, 1e-05
    %v573 = vrsqrt.pop %v572
    %v574 = vmul.f32 %v564, %v573
    %v575 = vmul.f32 %v565, %v573
    %v577 = vlaneseq
    %v578 = vshrl.u32 %v577, 7
    %v579 = vsub.s32 0, %v578
    %v580 = vrot.slane %v557, %v579
    %v581 = vlaneseq
    %v582 = vshrl.u32 %v581, 7
    %v583 = vsub.s32 1, %v582
    %v584 = vrot.slane %v557, %v583
    %v587 = vmul.f32 %v574, %v580
    %v588 = vmul.f32 %v575, %v584
    %v590 = vlaneseq
    %v591 = vshrl.u32 %v590, 7
    %v592 = vsub.s32 0, %v591
    %v593 = vrot.slane %v558, %v592
    %v594 = vlaneseq
    %v595 = vshrl.u32 %v594, 7
    %v596 = vsub.s32 1, %v595
    %v597 = vrot.slane %v558, %v596
    %v600 = vadd.f32 %v587, %v593
    %v601 = vadd.f32 %v588, %v597
    %v602 = vld [vmem:[#allocation13] sm:$0xff]
    %v603 = vld [vmem:[#allocation13 + $0x8] sm:$0xff]
    %v604 = vld [vmem:[#allocation13 + $0x10] sm:$0xff]
    %v605 = vld [vmem:[#allocation13 + $0x18] sm:$0xff]
    %v606 = vld [vmem:[#allocation13 + $0x20] sm:$0xff]
    %v607 = vld [vmem:[#allocation13 + $0x28] sm:$0xff]
    %v608 = vld [vmem:[#allocation13 + $0x30] sm:$0xff]
    %v609 = vld [vmem:[#allocation13 + $0x38] sm:$0xff]
    %v610 = vld [vmem:[#allocation13 + $0x40] sm:$0xff]
    %v611 = vld [vmem:[#allocation13 + $0x48] sm:$0xff]
    %v612 = vld [vmem:[#allocation13 + $0x50] sm:$0xff]
    %v613 = vld [vmem:[#allocation13 + $0x58] sm:$0xff]
    %v614 = vld [vmem:[#allocation13 + $0x60] sm:$0xff]
    %v615 = vld [vmem:[#allocation13 + $0x68] sm:$0xff]
    %v616 = vld [vmem:[#allocation13 + $0x70] sm:$0xff]
    %v617 = vld [vmem:[#allocation13 + $0x78] sm:$0xff]
    %v618 = vld [vmem:[#allocation13 + $0x80] sm:$0xff]
    %v619 = vld [vmem:[#allocation13 + $0x88] sm:$0xff]
    %v620 = vld [vmem:[#allocation13 + $0x90] sm:$0xff]
    %v621 = vld [vmem:[#allocation13 + $0x98] sm:$0xff]
    %v622 = vld [vmem:[#allocation13 + $0xa0] sm:$0xff]
    %v623 = vld [vmem:[#allocation13 + $0xa8] sm:$0xff]
    %v624 = vld [vmem:[#allocation13 + $0xb0] sm:$0xff]
    %v625 = vld [vmem:[#allocation13 + $0xb8] sm:$0xff]
    %v626 = vld [vmem:[#allocation13 + $0xc0] sm:$0xff]
    %v627 = vld [vmem:[#allocation13 + $0xc8] sm:$0xff]
    %v628 = vld [vmem:[#allocation13 + $0xd0] sm:$0xff]
    %v629 = vld [vmem:[#allocation13 + $0xd8] sm:$0xff]
    %v630 = vld [vmem:[#allocation13 + $0xe0] sm:$0xff]
    %v631 = vld [vmem:[#allocation13 + $0xe8] sm:$0xff]
    %v632 = vld [vmem:[#allocation13 + $0xf0] sm:$0xff]
    %v633 = vld [vmem:[#allocation13 + $0xf8] sm:$0xff]
    %v634 = vld [vmem:[#allocation13 + $0x100] sm:$0xff]
    %v635 = vld [vmem:[#allocation13 + $0x108] sm:$0xff]
    %v636 = vld [vmem:[#allocation13 + $0x110] sm:$0xff]
    %v637 = vld [vmem:[#allocation13 + $0x118] sm:$0xff]
    %v638 = vld [vmem:[#allocation13 + $0x120] sm:$0xff]
    %v639 = vld [vmem:[#allocation13 + $0x128] sm:$0xff]
    %v640 = vld [vmem:[#allocation13 + $0x130] sm:$0xff]
    %v641 = vld [vmem:[#allocation13 + $0x138] sm:$0xff]
    %v642 = vld [vmem:[#allocation13 + $0x140] sm:$0xff]
    %v643 = vld [vmem:[#allocation13 + $0x148] sm:$0xff]
    %v644 = vld [vmem:[#allocation13 + $0x150] sm:$0xff]
    %v645 = vld [vmem:[#allocation13 + $0x158] sm:$0xff]
    %v646 = vld [vmem:[#allocation13 + $0x160] sm:$0xff]
    %v647 = vld [vmem:[#allocation13 + $0x168] sm:$0xff]
    %v648 = vld [vmem:[#allocation13 + $0x170] sm:$0xff]
    %v649 = vld [vmem:[#allocation13 + $0x178] sm:$0xff]
    %v650 = vld [vmem:[#allocation13 + $0x180] sm:$0xff]
    %v651 = vld [vmem:[#allocation13 + $0x188] sm:$0xff]
    %v652 = vld [vmem:[#allocation13 + $0x190] sm:$0xff]
    %v653 = vld [vmem:[#allocation13 + $0x198] sm:$0xff]
    %v654 = vld [vmem:[#allocation13 + $0x1a0] sm:$0xff]
    %v655 = vld [vmem:[#allocation13 + $0x1a8] sm:$0xff]
    %v656 = vld [vmem:[#allocation13 + $0x1b0] sm:$0xff]
    %v657 = vld [vmem:[#allocation13 + $0x1b8] sm:$0xff]
    %v658 = vld [vmem:[#allocation13 + $0x1c0] sm:$0xff]
    %v659 = vld [vmem:[#allocation13 + $0x1c8] sm:$0xff]
    %v660 = vld [vmem:[#allocation13 + $0x1d0] sm:$0xff]
    %v661 = vld [vmem:[#allocation13 + $0x1d8] sm:$0xff]
    %v662 = vld [vmem:[#allocation13 + $0x1e0] sm:$0xff]
    %v663 = vld [vmem:[#allocation13 + $0x1e8] sm:$0xff]
    %v664 = vld [vmem:[#allocation13 + $0x1f0] sm:$0xff]
    %v665 = vld [vmem:[#allocation13 + $0x1f8] sm:$0xff]
    %v666 = vld [vmem:[#allocation15] sm:$0x3]
    %v668 = vlaneseq
    %v669 = vshrl.u32 %v668, 7
    %v670 = vsub.s32 0, %v669
    %v671 = vrot.slane %v666, %v670
    %v672 = vlaneseq
    %v673 = vshrl.u32 %v672, 7
    %v674 = vsub.s32 1, %v673
    %v675 = vrot.slane %v666, %v674
    %678 = vmatprep.subr.mxu0 %v603
    %679 = vmatpush1.msra.mxu0 %v602
    %680 = vmatprep.subr.mxu0 %v605
    %681 = vmatpush1.msra.mxu0 %v604
    %682 = vmatprep.subr.mxu0 %v607
    %683 = vmatpush1.msra.mxu0 %v606
    %684 = vmatprep.subr.mxu0 %v609
    %685 = vmatpush1.msra.mxu0 %v608
    %686 = vmatprep.subr.mxu0 %v611
    %687 = vmatpush1.msra.mxu0 %v610
    %688 = vmatprep.subr.mxu0 %v613
    %689 = vmatpush1.msra.mxu0 %v612
    %690 = vmatprep.subr.mxu0 %v615
    %691 = vmatpush1.msra.mxu0 %v614
    %692 = vmatprep.subr.mxu0 %v617
    %693 = vmatpush1.msra.mxu0 %v616
    %694 = vmatprep.subr.mxu0 %v619
    %695 = vmatpush1.msra.mxu0 %v618
    %696 = vmatprep.subr.mxu0 %v621
    %697 = vmatpush1.msra.mxu0 %v620
    %698 = vmatprep.subr.mxu0 %v623
    %699 = vmatpush1.msra.mxu0 %v622
    %700 = vmatprep.subr.mxu0 %v625
    %701 = vmatpush1.msra.mxu0 %v624
    %702 = vmatprep.subr.mxu0 %v627
    %703 = vmatpush1.msra.mxu0 %v626
    %704 = vmatprep.subr.mxu0 %v629
    %705 = vmatpush1.msra.mxu0 %v628
    %706 = vmatprep.subr.mxu0 %v631
    %707 = vmatpush1.msra.mxu0 %v630
    %708 = vmatprep.subr.mxu0 %v633
    %709 = vmatpush1.msra.mxu0 %v632
    %710 = vmatprep.subr.mxu0 %v635
    %711 = vmatpush1.msra.mxu0 %v634
    %712 = vmatprep.subr.mxu0 %v637
    %713 = vmatpush1.msra.mxu0 %v636
    %714 = vmatprep.subr.mxu0 %v639
    %715 = vmatpush1.msra.mxu0 %v638
    %716 = vmatprep.subr.mxu0 %v641
    %717 = vmatpush1.msra.mxu0 %v640
    %718 = vmatprep.subr.mxu0 %v643
    %719 = vmatpush1.msra.mxu0 %v642
    %720 = vmatprep.subr.mxu0 %v645
    %721 = vmatpush1.msra.mxu0 %v644
    %722 = vmatprep.subr.mxu0 %v647
    %723 = vmatpush1.msra.mxu0 %v646
    %724 = vmatprep.subr.mxu0 %v649
    %725 = vmatpush1.msra.mxu0 %v648
    %726 = vmatprep.subr.mxu0 %v651
    %727 = vmatpush1.msra.mxu0 %v650
    %728 = vmatprep.subr.mxu0 %v653
    %729 = vmatpush1.msra.mxu0 %v652
    %730 = vmatprep.subr.mxu0 %v655
    %731 = vmatpush1.msra.mxu0 %v654
    %732 = vmatprep.subr.mxu0 %v657
    %733 = vmatpush1.msra.mxu0 %v656
    %734 = vmatprep.subr.mxu0 %v659
    %735 = vmatpush1.msra.mxu0 %v658
    %736 = vmatprep.subr.mxu0 %v661
    %737 = vmatpush1.msra.mxu0 %v660
    %738 = vmatprep.subr.mxu0 %v663
    %739 = vmatpush1.msra.mxu0 %v662
    %740 = vmatprep.subr.mxu0 %v665
    %741 = vmatpush1.msra.mxu0 %v664
    %742 = vmatprep.mubr.f32.mxu0 %v601
    %743 = vmatmul.mubr.f32.gmra.mrb[0].mxu0 %v600
    %v744 = vpop.f32.mrb[0].mxu0
    %v745 = vadd.f32 %v671, %v744
    %v746 = vpop.f32.mrb[0].mxu0
    %v747 = vadd.f32 %v675, %v746
    %748 = vdwg.mxu0
    %v749 = vmul.f32 %v745, 0.5
    %v750 = vmul.f32 %v747, 0.5
    %v751 = vmul.f32 %v745, %v421
    %v752 = vmul.f32 %v747, %v421
    %v753 = verf.f32.pop %v751
    %v754 = verf.f32.pop %v752
    %v755 = vadd.f32 %v753, 1.0
    %v756 = vadd.f32 %v754, 1.0
    %v757 = vmul.f32 %v749, %v755
    %v758 = vmul.f32 %v750, %v756
    %v759 = vadd.f32 %v757, %v272
    %v760 = vadd.f32 %v758, %v274
    %761 = vst [vmem:[%s14] sm:$0xff] %v759
    %762 = vst [vmem:[%s14 + $0x8] sm:$0xff] %v760
    // Predicated region
    $region94: #{_lambda_.2} parent=1 // pred_check
      _
    $region95: #{_lambda_.2} parent=1 // pred_check_branch
      %764 = sbr.rel (0) target = $region97
    $region96: #{_lambda_.2} parent=1 // pred_region
      _
    $region97: #{_lambda_.2} parent=1 // pred_fallthru
      _
    // Predicated region
    $region98: #{_lambda_.2} parent=1 // pred_check
      _
    $region99: #{_lambda_.2} parent=1 // pred_check_branch
      %766 = sbr.rel (0) target = $region101
    $region100: #{_lambda_.2} parent=1 // pred_region
      _
    $region101: #{_lambda_.2} parent=1 // pred_fallthru
      _
    %767 = vsyncpa [#allocation3], 1
    %768 = vsyncpa [#allocation5], 1
    %769 = vsyncpa [#allocation8], 1
    %770 = vsyncpa [#allocation11], 1
    %771 = vsyncpa [#allocation14], 1

</llo_original>
